<compile_context>
chip_gen: v7x
topology: tpu7x:2x2x1
jax: 0.10.0
libtpu: 0.0.40
codegen_flags: <defaults>
</compile_context>

<pallas_src>
import functools

import jax
import jax.numpy as jnp
from jax.experimental import pallas as pl
from jax.experimental.pallas import tpu as pltpu


def _round_up(x: int, m: int) -> int:
    return (x + m - 1) // m * m


def fasttext_kernel(ids_ref, table_ref, w1_ref, b1_ref, w2_ref, b2_ref, out_ref):
    # ids_ref  : (TB, S)   int32  token ids for this batch tile
    # table_ref: (Vp, Ep)  f32    embedding table (resident in VMEM)
    # w1_ref   : (Ep, Hp)  f32    fc1 weight, pre-scaled by 1/S (mean folded in)
    # b1_ref   : (1, Hp)   f32
    # w2_ref   : (Hp, Cp)  f32    fc2 weight, zero-padded to Cp lanes
    # b2_ref   : (1, Cp)   f32
    # out_ref  : (TB, Cp)  f32
    ids = ids_ref[...]                                   # (TB, S)
    table = table_ref[...]                               # (Vp, Ep)
    TB, S = ids.shape
    Vp = table_ref.shape[0]

    # Bag-of-words counts: counts[b, v] = #{s : ids[b, s] == v}.
    # Built with lane-broadcast compares (VPU); S = pad_size is small & static.
    vocab_iota = jax.lax.broadcasted_iota(jnp.int32, (TB, Vp), 1)
    counts = jnp.zeros((TB, Vp), jnp.float32)
    for s in range(S):                                   # static unroll
        hit = ids[:, s:s + 1] == vocab_iota              # (TB, Vp) bool
        counts = counts + jnp.where(hit, 1.0, 0.0)

    # Fused embedding-gather + sequence sum: sum_s table[ids[b,s]] = counts @ table.
    # The 1/S mean scale is already folded into w1, so this is the raw sum.
    x = jnp.dot(counts, table, preferred_element_type=jnp.float32)        # (TB, Ep)

    # dropout: identity at inference
    h = jnp.dot(x, w1_ref[...], preferred_element_type=jnp.float32) + b1_ref[...]
    h = jnp.maximum(h, 0.0)                                                # ReLU
    out = jnp.dot(h, w2_ref[...], preferred_element_type=jnp.float32) + b2_ref[...]
    out_ref[...] = out.astype(out_ref.dtype)


def prepare_params(embedding_table, w1, b1, w2, b2, *, seq_len):
    """One-time (offline) weight prep: zero-pad to lane-dense shapes and fold 1/S into fc1."""
    V, E = embedding_table.shape
    H = w1.shape[1]
    C = w2.shape[1]
    Vp = _round_up(V, 128)
    Ep = _round_up(E, 128)
    Hp = _round_up(H, 128)
    Cp = _round_up(C, 128)

    table_p = jnp.zeros((Vp, Ep), jnp.float32).at[:V, :E].set(embedding_table)
    w1_p = jnp.zeros((Ep, Hp), jnp.float32).at[:E, :H].set(w1 / float(seq_len))
    b1_p = jnp.zeros((1, Hp), jnp.float32).at[:, :H].set(b1.reshape(1, H))
    w2_p = jnp.zeros((Hp, Cp), jnp.float32).at[:H, :C].set(w2)
    b2_p = jnp.zeros((1, Cp), jnp.float32).at[:, :C].set(b2.reshape(1, C))
    return table_p, w1_p, b1_p, w2_p, b2_p


def fasttext_forward(token_ids, table, w1, b1, w2, b2, *, num_classes, batch_tile=8):
    """token_ids: (B, S) int32; returns (B, num_classes) f32."""
    B, S = token_ids.shape
    Vp, Ep = table.shape
    Hp = w1.shape[1]
    Cp = w2.shape[1]

    TB = batch_tile                       # sublane-aligned batch tile (>=8); bigger in prod
    Bp = _round_up(B, TB)

    # Clamp ids (matches jnp.take/clamping semantics; padded table rows are zero anyway)
    ids = jnp.clip(token_ids.astype(jnp.int32), 0, Vp - 1)
    if Bp != B:
        ids = jnp.pad(ids, ((0, Bp - B), (0, 0)))

    grid = (Bp // TB,)

    flops = 2 * Bp * (Vp * Ep + Ep * Hp + Hp * Cp) + Bp * S * Vp
    bytes_accessed = 4 * (Bp * S + Vp * Ep + Ep * Hp + Hp + Hp * Cp + Cp + Bp * Cp)

    out = pl.pallas_call(
        fasttext_kernel,
        out_shape=jax.ShapeDtypeStruct((Bp, Cp), jnp.float32),
        grid=grid,
        in_specs=[
            pl.BlockSpec((TB, S), lambda i: (i, 0)),      # token ids, tiled over batch
            pl.BlockSpec((Vp, Ep), lambda i: (0, 0)),     # embedding table, resident
            pl.BlockSpec((Ep, Hp), lambda i: (0, 0)),     # fc1 weight (pre-scaled by 1/S)
            pl.BlockSpec((1, Hp), lambda i: (0, 0)),      # fc1 bias
            pl.BlockSpec((Hp, Cp), lambda i: (0, 0)),     # fc2 weight (padded lanes)
            pl.BlockSpec((1, Cp), lambda i: (0, 0)),      # fc2 bias (padded lanes)
        ],
        out_specs=pl.BlockSpec((TB, Cp), lambda i: (i, 0)),
        compiler_params=pltpu.CompilerParams(
            dimension_semantics=("parallel",),            # shard batch tiles across TCs (v7x)
            vmem_limit_bytes=32 * 1024 * 1024,
        ),
        cost_estimate=pl.CostEstimate(
            flops=flops, transcendentals=0, bytes_accessed=bytes_accessed
        ),
    )(ids, table, w1, b1, w2, b2)

    return out[:B, :num_classes]


def reference_forward(token_ids, embedding_table, w1, b1, w2, b2):
    emb = jnp.take(embedding_table, token_ids, axis=0)    # (B, S, E)
    mean = jnp.mean(emb, axis=1)                          # (B, E)
    h = jnp.maximum(mean @ w1 + b1, 0.0)
    return h @ w2 + b2


if __name__ == "__main__":
    # Small shapes consistent with the module (scaled down from
    # embed=300 / hidden=256 / n_vocab>>500 for a quick smoke test).
    B = 32           # batch_size
    S = 32           # pad_size (sequence length)
    V = 500          # n_vocab
    E = 128          # embed
    H = 128          # hidden_size
    C = 10           # num_classes

    key = jax.random.PRNGKey(0)
    k_emb, k_w1, k_b1, k_w2, k_b2, k_ids = jax.random.split(key, 6)

    embedding_table = jax.random.normal(k_emb, (V, E), jnp.float32) * 0.1
    embedding_table = embedding_table.at[V - 1].set(0.0)  # padding_idx = n_vocab - 1
    w1 = jax.random.normal(k_w1, (E, H), jnp.float32) * 0.05
    b1 = jax.random.normal(k_b1, (H,), jnp.float32) * 0.01
    w2 = jax.random.normal(k_w2, (H, C), jnp.float32) * 0.05
    b2 = jax.random.normal(k_b2, (C,), jnp.float32) * 0.01

    # Deterministic example input: x[0] = token ids of shape (B, S).
    token_ids = jax.random.randint(k_ids, (B, S), 0, V, jnp.int32)

    # Offline weight prep (padding + folding the 1/S mean scale into fc1).
    table_p, w1_p, b1_p, w2_p, b2_p = prepare_params(
        embedding_table, w1, b1, w2, b2, seq_len=S
    )

    fwd = jax.jit(functools.partial(fasttext_forward, num_classes=C, batch_tile=8))
    out = fwd(token_ids, table_p, w1_p, b1_p, w2_p, b2_p)
    out = jax.block_until_ready(out)

    ref = reference_forward(token_ids, embedding_table, w1, b1, w2, b2)
    assert out.shape == (B, C)
    assert jnp.allclose(out, ref, atol=1e-4, rtol=1e-4), "mismatch vs reference"

    print("KERNEL_OK")
</pallas_src>

<mosaic_0001>
module attributes {stable_mosaic.version = 11 : i64} {
  func.func @fasttext_kernel(%arg0: i32, %arg1: memref<8x32xi32, #tpu.memory_space<vmem>>, %arg2: memref<512x128xf32, #tpu.memory_space<vmem>>, %arg3: memref<128x128xf32, #tpu.memory_space<vmem>>, %arg4: memref<1x128xf32, #tpu.memory_space<vmem>>, %arg5: memref<128x128xf32, #tpu.memory_space<vmem>>, %arg6: memref<1x128xf32, #tpu.memory_space<vmem>>, %arg7: memref<8x128xf32, #tpu.memory_space<vmem>>) attributes {dimension_semantics = [#tpu.dimension_semantics<parallel>], iteration_bounds = array<i64: 4>, scalar_prefetch = 0 : i64, scratch_operands = 0 : i64, tpu.core_type = #tpu.core_type<tc>, window_params = [{transform_indices = @transform_0, window_bounds = array<i64: 8, 32>}, {pipeline_mode = #tpu.pipeline_mode<synchronous>, transform_indices = @transform_1, window_bounds = array<i64: 512, 128>}, {pipeline_mode = #tpu.pipeline_mode<synchronous>, transform_indices = @transform_2, window_bounds = array<i64: 128, 128>}, {pipeline_mode = #tpu.pipeline_mode<synchronous>, transform_indices = @transform_3, window_bounds = array<i64: 1, 128>}, {pipeline_mode = #tpu.pipeline_mode<synchronous>, transform_indices = @transform_4, window_bounds = array<i64: 128, 128>}, {pipeline_mode = #tpu.pipeline_mode<synchronous>, transform_indices = @transform_5, window_bounds = array<i64: 1, 128>}, {transform_indices = @transform_6, window_bounds = array<i64: 8, 128>}]} {
    %c0 = arith.constant 0 : index
    %c0_0 = arith.constant 0 : index
    %0 = vector.load %arg1[%c0, %c0_0] : memref<8x32xi32, #tpu.memory_space<vmem>>, vector<8x32xi32>
    %c0_1 = arith.constant 0 : index
    %c0_2 = arith.constant 0 : index
    %1 = vector.load %arg2[%c0_1, %c0_2] : memref<512x128xf32, #tpu.memory_space<vmem>>, vector<512x128xf32>
    %2 = tpu.iota {dimensions = array<i32: 1>} : vector<8x512xi32>
    %cst = arith.constant 0.000000e+00 : f32
    %3 = vector.broadcast %cst : f32 to vector<8x512xf32>
    %4 = vector.extract_strided_slice %0 {offsets = [0, 0], sizes = [8, 1], strides = [1, 1]} : vector<8x32xi32> to vector<8x1xi32>
    %5 = vector.broadcast %4 : vector<8x1xi32> to vector<8x512xi32>
    %6 = arith.cmpi eq, %5, %2 : vector<8x512xi32>
    %cst_3 = arith.constant 1.000000e+00 : f32
    %cst_4 = arith.constant 0.000000e+00 : f32
    %7 = vector.broadcast %cst_3 : f32 to vector<8x512xf32>
    %8 = vector.broadcast %cst_4 : f32 to vector<8x512xf32>
    %9 = arith.select %6, %7, %8 : vector<8x512xi1>, vector<8x512xf32>
    %10 = arith.addf %3, %9 : vector<8x512xf32>
    %11 = vector.extract_strided_slice %0 {offsets = [0, 1], sizes = [8, 1], strides = [1, 1]} : vector<8x32xi32> to vector<8x1xi32>
    %12 = vector.broadcast %11 : vector<8x1xi32> to vector<8x512xi32>
    %13 = arith.cmpi eq, %12, %2 : vector<8x512xi32>
    %cst_5 = arith.constant 1.000000e+00 : f32
    %cst_6 = arith.constant 0.000000e+00 : f32
    %14 = vector.broadcast %cst_5 : f32 to vector<8x512xf32>
    %15 = vector.broadcast %cst_6 : f32 to vector<8x512xf32>
    %16 = arith.select %13, %14, %15 : vector<8x512xi1>, vector<8x512xf32>
    %17 = arith.addf %10, %16 : vector<8x512xf32>
    %18 = vector.extract_strided_slice %0 {offsets = [0, 2], sizes = [8, 1], strides = [1, 1]} : vector<8x32xi32> to vector<8x1xi32>
    %19 = vector.broadcast %18 : vector<8x1xi32> to vector<8x512xi32>
    %20 = arith.cmpi eq, %19, %2 : vector<8x512xi32>
    %cst_7 = arith.constant 1.000000e+00 : f32
    %cst_8 = arith.constant 0.000000e+00 : f32
    %21 = vector.broadcast %cst_7 : f32 to vector<8x512xf32>
    %22 = vector.broadcast %cst_8 : f32 to vector<8x512xf32>
    %23 = arith.select %20, %21, %22 : vector<8x512xi1>, vector<8x512xf32>
    %24 = arith.addf %17, %23 : vector<8x512xf32>
    %25 = vector.extract_strided_slice %0 {offsets = [0, 3], sizes = [8, 1], strides = [1, 1]} : vector<8x32xi32> to vector<8x1xi32>
    %26 = vector.broadcast %25 : vector<8x1xi32> to vector<8x512xi32>
    %27 = arith.cmpi eq, %26, %2 : vector<8x512xi32>
    %cst_9 = arith.constant 1.000000e+00 : f32
    %cst_10 = arith.constant 0.000000e+00 : f32
    %28 = vector.broadcast %cst_9 : f32 to vector<8x512xf32>
    %29 = vector.broadcast %cst_10 : f32 to vector<8x512xf32>
    %30 = arith.select %27, %28, %29 : vector<8x512xi1>, vector<8x512xf32>
    %31 = arith.addf %24, %30 : vector<8x512xf32>
    %32 = vector.extract_strided_slice %0 {offsets = [0, 4], sizes = [8, 1], strides = [1, 1]} : vector<8x32xi32> to vector<8x1xi32>
    %33 = vector.broadcast %32 : vector<8x1xi32> to vector<8x512xi32>
    %34 = arith.cmpi eq, %33, %2 : vector<8x512xi32>
    %cst_11 = arith.constant 1.000000e+00 : f32
    %cst_12 = arith.constant 0.000000e+00 : f32
    %35 = vector.broadcast %cst_11 : f32 to vector<8x512xf32>
    %36 = vector.broadcast %cst_12 : f32 to vector<8x512xf32>
    %37 = arith.select %34, %35, %36 : vector<8x512xi1>, vector<8x512xf32>
    %38 = arith.addf %31, %37 : vector<8x512xf32>
    %39 = vector.extract_strided_slice %0 {offsets = [0, 5], sizes = [8, 1], strides = [1, 1]} : vector<8x32xi32> to vector<8x1xi32>
    %40 = vector.broadcast %39 : vector<8x1xi32> to vector<8x512xi32>
    %41 = arith.cmpi eq, %40, %2 : vector<8x512xi32>
    %cst_13 = arith.constant 1.000000e+00 : f32
    %cst_14 = arith.constant 0.000000e+00 : f32
    %42 = vector.broadcast %cst_13 : f32 to vector<8x512xf32>
    %43 = vector.broadcast %cst_14 : f32 to vector<8x512xf32>
    %44 = arith.select %41, %42, %43 : vector<8x512xi1>, vector<8x512xf32>
    %45 = arith.addf %38, %44 : vector<8x512xf32>
    %46 = vector.extract_strided_slice %0 {offsets = [0, 6], sizes = [8, 1], strides = [1, 1]} : vector<8x32xi32> to vector<8x1xi32>
    %47 = vector.broadcast %46 : vector<8x1xi32> to vector<8x512xi32>
    %48 = arith.cmpi eq, %47, %2 : vector<8x512xi32>
    %cst_15 = arith.constant 1.000000e+00 : f32
    %cst_16 = arith.constant 0.000000e+00 : f32
    %49 = vector.broadcast %cst_15 : f32 to vector<8x512xf32>
    %50 = vector.broadcast %cst_16 : f32 to vector<8x512xf32>
    %51 = arith.select %48, %49, %50 : vector<8x512xi1>, vector<8x512xf32>
    %52 = arith.addf %45, %51 : vector<8x512xf32>
    %53 = vector.extract_strided_slice %0 {offsets = [0, 7], sizes = [8, 1], strides = [1, 1]} : vector<8x32xi32> to vector<8x1xi32>
    %54 = vector.broadcast %53 : vector<8x1xi32> to vector<8x512xi32>
    %55 = arith.cmpi eq, %54, %2 : vector<8x512xi32>
    %cst_17 = arith.constant 1.000000e+00 : f32
    %cst_18 = arith.constant 0.000000e+00 : f32
    %56 = vector.broadcast %cst_17 : f32 to vector<8x512xf32>
    %57 = vector.broadcast %cst_18 : f32 to vector<8x512xf32>
    %58 = arith.select %55, %56, %57 : vector<8x512xi1>, vector<8x512xf32>
    %59 = arith.addf %52, %58 : vector<8x512xf32>
    %60 = vector.extract_strided_slice %0 {offsets = [0, 8], sizes = [8, 1], strides = [1, 1]} : vector<8x32xi32> to vector<8x1xi32>
    %61 = vector.broadcast %60 : vector<8x1xi32> to vector<8x512xi32>
    %62 = arith.cmpi eq, %61, %2 : vector<8x512xi32>
    %cst_19 = arith.constant 1.000000e+00 : f32
    %cst_20 = arith.constant 0.000000e+00 : f32
    %63 = vector.broadcast %cst_19 : f32 to vector<8x512xf32>
    %64 = vector.broadcast %cst_20 : f32 to vector<8x512xf32>
    %65 = arith.select %62, %63, %64 : vector<8x512xi1>, vector<8x512xf32>
    %66 = arith.addf %59, %65 : vector<8x512xf32>
    %67 = vector.extract_strided_slice %0 {offsets = [0, 9], sizes = [8, 1], strides = [1, 1]} : vector<8x32xi32> to vector<8x1xi32>
    %68 = vector.broadcast %67 : vector<8x1xi32> to vector<8x512xi32>
    %69 = arith.cmpi eq, %68, %2 : vector<8x512xi32>
    %cst_21 = arith.constant 1.000000e+00 : f32
    %cst_22 = arith.constant 0.000000e+00 : f32
    %70 = vector.broadcast %cst_21 : f32 to vector<8x512xf32>
    %71 = vector.broadcast %cst_22 : f32 to vector<8x512xf32>
    %72 = arith.select %69, %70, %71 : vector<8x512xi1>, vector<8x512xf32>
    %73 = arith.addf %66, %72 : vector<8x512xf32>
    %74 = vector.extract_strided_slice %0 {offsets = [0, 10], sizes = [8, 1], strides = [1, 1]} : vector<8x32xi32> to vector<8x1xi32>
    %75 = vector.broadcast %74 : vector<8x1xi32> to vector<8x512xi32>
    %76 = arith.cmpi eq, %75, %2 : vector<8x512xi32>
    %cst_23 = arith.constant 1.000000e+00 : f32
    %cst_24 = arith.constant 0.000000e+00 : f32
    %77 = vector.broadcast %cst_23 : f32 to vector<8x512xf32>
    %78 = vector.broadcast %cst_24 : f32 to vector<8x512xf32>
    %79 = arith.select %76, %77, %78 : vector<8x512xi1>, vector<8x512xf32>
    %80 = arith.addf %73, %79 : vector<8x512xf32>
    %81 = vector.extract_strided_slice %0 {offsets = [0, 11], sizes = [8, 1], strides = [1, 1]} : vector<8x32xi32> to vector<8x1xi32>
    %82 = vector.broadcast %81 : vector<8x1xi32> to vector<8x512xi32>
    %83 = arith.cmpi eq, %82, %2 : vector<8x512xi32>
    %cst_25 = arith.constant 1.000000e+00 : f32
    %cst_26 = arith.constant 0.000000e+00 : f32
    %84 = vector.broadcast %cst_25 : f32 to vector<8x512xf32>
    %85 = vector.broadcast %cst_26 : f32 to vector<8x512xf32>
    %86 = arith.select %83, %84, %85 : vector<8x512xi1>, vector<8x512xf32>
    %87 = arith.addf %80, %86 : vector<8x512xf32>
    %88 = vector.extract_strided_slice %0 {offsets = [0, 12], sizes = [8, 1], strides = [1, 1]} : vector<8x32xi32> to vector<8x1xi32>
    %89 = vector.broadcast %88 : vector<8x1xi32> to vector<8x512xi32>
    %90 = arith.cmpi eq, %89, %2 : vector<8x512xi32>
    %cst_27 = arith.constant 1.000000e+00 : f32
    %cst_28 = arith.constant 0.000000e+00 : f32
    %91 = vector.broadcast %cst_27 : f32 to vector<8x512xf32>
    %92 = vector.broadcast %cst_28 : f32 to vector<8x512xf32>
    %93 = arith.select %90, %91, %92 : vector<8x512xi1>, vector<8x512xf32>
    %94 = arith.addf %87, %93 : vector<8x512xf32>
    %95 = vector.extract_strided_slice %0 {offsets = [0, 13], sizes = [8, 1], strides = [1, 1]} : vector<8x32xi32> to vector<8x1xi32>
    %96 = vector.broadcast %95 : vector<8x1xi32> to vector<8x512xi32>
    %97 = arith.cmpi eq, %96, %2 : vector<8x512xi32>
    %cst_29 = arith.constant 1.000000e+00 : f32
    %cst_30 = arith.constant 0.000000e+00 : f32
    %98 = vector.broadcast %cst_29 : f32 to vector<8x512xf32>
    %99 = vector.broadcast %cst_30 : f32 to vector<8x512xf32>
    %100 = arith.select %97, %98, %99 : vector<8x512xi1>, vector<8x512xf32>
    %101 = arith.addf %94, %100 : vector<8x512xf32>
    %102 = vector.extract_strided_slice %0 {offsets = [0, 14], sizes = [8, 1], strides = [1, 1]} : vector<8x32xi32> to vector<8x1xi32>
    %103 = vector.broadcast %102 : vector<8x1xi32> to vector<8x512xi32>
    %104 = arith.cmpi eq, %103, %2 : vector<8x512xi32>
    %cst_31 = arith.constant 1.000000e+00 : f32
    %cst_32 = arith.constant 0.000000e+00 : f32
    %105 = vector.broadcast %cst_31 : f32 to vector<8x512xf32>
    %106 = vector.broadcast %cst_32 : f32 to vector<8x512xf32>
    %107 = arith.select %104, %105, %106 : vector<8x512xi1>, vector<8x512xf32>
    %108 = arith.addf %101, %107 : vector<8x512xf32>
    %109 = vector.extract_strided_slice %0 {offsets = [0, 15], sizes = [8, 1], strides = [1, 1]} : vector<8x32xi32> to vector<8x1xi32>
    %110 = vector.broadcast %109 : vector<8x1xi32> to vector<8x512xi32>
    %111 = arith.cmpi eq, %110, %2 : vector<8x512xi32>
    %cst_33 = arith.constant 1.000000e+00 : f32
    %cst_34 = arith.constant 0.000000e+00 : f32
    %112 = vector.broadcast %cst_33 : f32 to vector<8x512xf32>
    %113 = vector.broadcast %cst_34 : f32 to vector<8x512xf32>
    %114 = arith.select %111, %112, %113 : vector<8x512xi1>, vector<8x512xf32>
    %115 = arith.addf %108, %114 : vector<8x512xf32>
    %116 = vector.extract_strided_slice %0 {offsets = [0, 16], sizes = [8, 1], strides = [1, 1]} : vector<8x32xi32> to vector<8x1xi32>
    %117 = vector.broadcast %116 : vector<8x1xi32> to vector<8x512xi32>
    %118 = arith.cmpi eq, %117, %2 : vector<8x512xi32>
    %cst_35 = arith.constant 1.000000e+00 : f32
    %cst_36 = arith.constant 0.000000e+00 : f32
    %119 = vector.broadcast %cst_35 : f32 to vector<8x512xf32>
    %120 = vector.broadcast %cst_36 : f32 to vector<8x512xf32>
    %121 = arith.select %118, %119, %120 : vector<8x512xi1>, vector<8x512xf32>
    %122 = arith.addf %115, %121 : vector<8x512xf32>
    %123 = vector.extract_strided_slice %0 {offsets = [0, 17], sizes = [8, 1], strides = [1, 1]} : vector<8x32xi32> to vector<8x1xi32>
    %124 = vector.broadcast %123 : vector<8x1xi32> to vector<8x512xi32>
    %125 = arith.cmpi eq, %124, %2 : vector<8x512xi32>
    %cst_37 = arith.constant 1.000000e+00 : f32
    %cst_38 = arith.constant 0.000000e+00 : f32
    %126 = vector.broadcast %cst_37 : f32 to vector<8x512xf32>
    %127 = vector.broadcast %cst_38 : f32 to vector<8x512xf32>
    %128 = arith.select %125, %126, %127 : vector<8x512xi1>, vector<8x512xf32>
    %129 = arith.addf %122, %128 : vector<8x512xf32>
    %130 = vector.extract_strided_slice %0 {offsets = [0, 18], sizes = [8, 1], strides = [1, 1]} : vector<8x32xi32> to vector<8x1xi32>
    %131 = vector.broadcast %130 : vector<8x1xi32> to vector<8x512xi32>
    %132 = arith.cmpi eq, %131, %2 : vector<8x512xi32>
    %cst_39 = arith.constant 1.000000e+00 : f32
    %cst_40 = arith.constant 0.000000e+00 : f32
    %133 = vector.broadcast %cst_39 : f32 to vector<8x512xf32>
    %134 = vector.broadcast %cst_40 : f32 to vector<8x512xf32>
    %135 = arith.select %132, %133, %134 : vector<8x512xi1>, vector<8x512xf32>
    %136 = arith.addf %129, %135 : vector<8x512xf32>
    %137 = vector.extract_strided_slice %0 {offsets = [0, 19], sizes = [8, 1], strides = [1, 1]} : vector<8x32xi32> to vector<8x1xi32>
    %138 = vector.broadcast %137 : vector<8x1xi32> to vector<8x512xi32>
    %139 = arith.cmpi eq, %138, %2 : vector<8x512xi32>
    %cst_41 = arith.constant 1.000000e+00 : f32
    %cst_42 = arith.constant 0.000000e+00 : f32
    %140 = vector.broadcast %cst_41 : f32 to vector<8x512xf32>
    %141 = vector.broadcast %cst_42 : f32 to vector<8x512xf32>
    %142 = arith.select %139, %140, %141 : vector<8x512xi1>, vector<8x512xf32>
    %143 = arith.addf %136, %142 : vector<8x512xf32>
    %144 = vector.extract_strided_slice %0 {offsets = [0, 20], sizes = [8, 1], strides = [1, 1]} : vector<8x32xi32> to vector<8x1xi32>
    %145 = vector.broadcast %144 : vector<8x1xi32> to vector<8x512xi32>
    %146 = arith.cmpi eq, %145, %2 : vector<8x512xi32>
    %cst_43 = arith.constant 1.000000e+00 : f32
    %cst_44 = arith.constant 0.000000e+00 : f32
    %147 = vector.broadcast %cst_43 : f32 to vector<8x512xf32>
    %148 = vector.broadcast %cst_44 : f32 to vector<8x512xf32>
    %149 = arith.select %146, %147, %148 : vector<8x512xi1>, vector<8x512xf32>
    %150 = arith.addf %143, %149 : vector<8x512xf32>
    %151 = vector.extract_strided_slice %0 {offsets = [0, 21], sizes = [8, 1], strides = [1, 1]} : vector<8x32xi32> to vector<8x1xi32>
    %152 = vector.broadcast %151 : vector<8x1xi32> to vector<8x512xi32>
    %153 = arith.cmpi eq, %152, %2 : vector<8x512xi32>
    %cst_45 = arith.constant 1.000000e+00 : f32
    %cst_46 = arith.constant 0.000000e+00 : f32
    %154 = vector.broadcast %cst_45 : f32 to vector<8x512xf32>
    %155 = vector.broadcast %cst_46 : f32 to vector<8x512xf32>
    %156 = arith.select %153, %154, %155 : vector<8x512xi1>, vector<8x512xf32>
    %157 = arith.addf %150, %156 : vector<8x512xf32>
    %158 = vector.extract_strided_slice %0 {offsets = [0, 22], sizes = [8, 1], strides = [1, 1]} : vector<8x32xi32> to vector<8x1xi32>
    %159 = vector.broadcast %158 : vector<8x1xi32> to vector<8x512xi32>
    %160 = arith.cmpi eq, %159, %2 : vector<8x512xi32>
    %cst_47 = arith.constant 1.000000e+00 : f32
    %cst_48 = arith.constant 0.000000e+00 : f32
    %161 = vector.broadcast %cst_47 : f32 to vector<8x512xf32>
    %162 = vector.broadcast %cst_48 : f32 to vector<8x512xf32>
    %163 = arith.select %160, %161, %162 : vector<8x512xi1>, vector<8x512xf32>
    %164 = arith.addf %157, %163 : vector<8x512xf32>
    %165 = vector.extract_strided_slice %0 {offsets = [0, 23], sizes = [8, 1], strides = [1, 1]} : vector<8x32xi32> to vector<8x1xi32>
    %166 = vector.broadcast %165 : vector<8x1xi32> to vector<8x512xi32>
    %167 = arith.cmpi eq, %166, %2 : vector<8x512xi32>
    %cst_49 = arith.constant 1.000000e+00 : f32
    %cst_50 = arith.constant 0.000000e+00 : f32
    %168 = vector.broadcast %cst_49 : f32 to vector<8x512xf32>
    %169 = vector.broadcast %cst_50 : f32 to vector<8x512xf32>
    %170 = arith.select %167, %168, %169 : vector<8x512xi1>, vector<8x512xf32>
    %171 = arith.addf %164, %170 : vector<8x512xf32>
    %172 = vector.extract_strided_slice %0 {offsets = [0, 24], sizes = [8, 1], strides = [1, 1]} : vector<8x32xi32> to vector<8x1xi32>
    %173 = vector.broadcast %172 : vector<8x1xi32> to vector<8x512xi32>
    %174 = arith.cmpi eq, %173, %2 : vector<8x512xi32>
    %cst_51 = arith.constant 1.000000e+00 : f32
    %cst_52 = arith.constant 0.000000e+00 : f32
    %175 = vector.broadcast %cst_51 : f32 to vector<8x512xf32>
    %176 = vector.broadcast %cst_52 : f32 to vector<8x512xf32>
    %177 = arith.select %174, %175, %176 : vector<8x512xi1>, vector<8x512xf32>
    %178 = arith.addf %171, %177 : vector<8x512xf32>
    %179 = vector.extract_strided_slice %0 {offsets = [0, 25], sizes = [8, 1], strides = [1, 1]} : vector<8x32xi32> to vector<8x1xi32>
    %180 = vector.broadcast %179 : vector<8x1xi32> to vector<8x512xi32>
    %181 = arith.cmpi eq, %180, %2 : vector<8x512xi32>
    %cst_53 = arith.constant 1.000000e+00 : f32
    %cst_54 = arith.constant 0.000000e+00 : f32
    %182 = vector.broadcast %cst_53 : f32 to vector<8x512xf32>
    %183 = vector.broadcast %cst_54 : f32 to vector<8x512xf32>
    %184 = arith.select %181, %182, %183 : vector<8x512xi1>, vector<8x512xf32>
    %185 = arith.addf %178, %184 : vector<8x512xf32>
    %186 = vector.extract_strided_slice %0 {offsets = [0, 26], sizes = [8, 1], strides = [1, 1]} : vector<8x32xi32> to vector<8x1xi32>
    %187 = vector.broadcast %186 : vector<8x1xi32> to vector<8x512xi32>
    %188 = arith.cmpi eq, %187, %2 : vector<8x512xi32>
    %cst_55 = arith.constant 1.000000e+00 : f32
    %cst_56 = arith.constant 0.000000e+00 : f32
    %189 = vector.broadcast %cst_55 : f32 to vector<8x512xf32>
    %190 = vector.broadcast %cst_56 : f32 to vector<8x512xf32>
    %191 = arith.select %188, %189, %190 : vector<8x512xi1>, vector<8x512xf32>
    %192 = arith.addf %185, %191 : vector<8x512xf32>
    %193 = vector.extract_strided_slice %0 {offsets = [0, 27], sizes = [8, 1], strides = [1, 1]} : vector<8x32xi32> to vector<8x1xi32>
    %194 = vector.broadcast %193 : vector<8x1xi32> to vector<8x512xi32>
    %195 = arith.cmpi eq, %194, %2 : vector<8x512xi32>
    %cst_57 = arith.constant 1.000000e+00 : f32
    %cst_58 = arith.constant 0.000000e+00 : f32
    %196 = vector.broadcast %cst_57 : f32 to vector<8x512xf32>
    %197 = vector.broadcast %cst_58 : f32 to vector<8x512xf32>
    %198 = arith.select %195, %196, %197 : vector<8x512xi1>, vector<8x512xf32>
    %199 = arith.addf %192, %198 : vector<8x512xf32>
    %200 = vector.extract_strided_slice %0 {offsets = [0, 28], sizes = [8, 1], strides = [1, 1]} : vector<8x32xi32> to vector<8x1xi32>
    %201 = vector.broadcast %200 : vector<8x1xi32> to vector<8x512xi32>
    %202 = arith.cmpi eq, %201, %2 : vector<8x512xi32>
    %cst_59 = arith.constant 1.000000e+00 : f32
    %cst_60 = arith.constant 0.000000e+00 : f32
    %203 = vector.broadcast %cst_59 : f32 to vector<8x512xf32>
    %204 = vector.broadcast %cst_60 : f32 to vector<8x512xf32>
    %205 = arith.select %202, %203, %204 : vector<8x512xi1>, vector<8x512xf32>
    %206 = arith.addf %199, %205 : vector<8x512xf32>
    %207 = vector.extract_strided_slice %0 {offsets = [0, 29], sizes = [8, 1], strides = [1, 1]} : vector<8x32xi32> to vector<8x1xi32>
    %208 = vector.broadcast %207 : vector<8x1xi32> to vector<8x512xi32>
    %209 = arith.cmpi eq, %208, %2 : vector<8x512xi32>
    %cst_61 = arith.constant 1.000000e+00 : f32
    %cst_62 = arith.constant 0.000000e+00 : f32
    %210 = vector.broadcast %cst_61 : f32 to vector<8x512xf32>
    %211 = vector.broadcast %cst_62 : f32 to vector<8x512xf32>
    %212 = arith.select %209, %210, %211 : vector<8x512xi1>, vector<8x512xf32>
    %213 = arith.addf %206, %212 : vector<8x512xf32>
    %214 = vector.extract_strided_slice %0 {offsets = [0, 30], sizes = [8, 1], strides = [1, 1]} : vector<8x32xi32> to vector<8x1xi32>
    %215 = vector.broadcast %214 : vector<8x1xi32> to vector<8x512xi32>
    %216 = arith.cmpi eq, %215, %2 : vector<8x512xi32>
    %cst_63 = arith.constant 1.000000e+00 : f32
    %cst_64 = arith.constant 0.000000e+00 : f32
    %217 = vector.broadcast %cst_63 : f32 to vector<8x512xf32>
    %218 = vector.broadcast %cst_64 : f32 to vector<8x512xf32>
    %219 = arith.select %216, %217, %218 : vector<8x512xi1>, vector<8x512xf32>
    %220 = arith.addf %213, %219 : vector<8x512xf32>
    %221 = vector.extract_strided_slice %0 {offsets = [0, 31], sizes = [8, 1], strides = [1, 1]} : vector<8x32xi32> to vector<8x1xi32>
    %222 = vector.broadcast %221 : vector<8x1xi32> to vector<8x512xi32>
    %223 = arith.cmpi eq, %222, %2 : vector<8x512xi32>
    %cst_65 = arith.constant 1.000000e+00 : f32
    %cst_66 = arith.constant 0.000000e+00 : f32
    %224 = vector.broadcast %cst_65 : f32 to vector<8x512xf32>
    %225 = vector.broadcast %cst_66 : f32 to vector<8x512xf32>
    %226 = arith.select %223, %224, %225 : vector<8x512xi1>, vector<8x512xf32>
    %227 = arith.addf %220, %226 : vector<8x512xf32>
    %cst_67 = arith.constant dense<0.000000e+00> : vector<8x128xf32>
    %228 = tpu.matmul %227, %1, %cst_67 {dimension_numbers = #tpu.dot_dimension_numbers<[1], [0], [0], [1], [0, 0, 1, 1], [], []>} : vector<8x512xf32>, vector<512x128xf32>, vector<8x128xf32> -> vector<8x128xf32>
    %c0_68 = arith.constant 0 : index
    %c0_69 = arith.constant 0 : index
    %229 = vector.load %arg3[%c0_68, %c0_69] : memref<128x128xf32, #tpu.memory_space<vmem>>, vector<128x128xf32>
    %cst_70 = arith.constant dense<0.000000e+00> : vector<8x128xf32>
    %230 = tpu.matmul %228, %229, %cst_70 {dimension_numbers = #tpu.dot_dimension_numbers<[1], [0], [0], [1], [0, 0, 1, 1], [], []>} : vector<8x128xf32>, vector<128x128xf32>, vector<8x128xf32> -> vector<8x128xf32>
    %c0_71 = arith.constant 0 : index
    %c0_72 = arith.constant 0 : index
    %231 = vector.load %arg4[%c0_71, %c0_72] : memref<1x128xf32, #tpu.memory_space<vmem>>, vector<1x128xf32>
    %232 = vector.broadcast %231 : vector<1x128xf32> to vector<8x128xf32>
    %233 = arith.addf %230, %232 : vector<8x128xf32>
    %cst_73 = arith.constant 0.000000e+00 : f32
    %234 = vector.broadcast %cst_73 : f32 to vector<8x128xf32>
    %235 = arith.maximumf %233, %234 : vector<8x128xf32>
    %c0_74 = arith.constant 0 : index
    %c0_75 = arith.constant 0 : index
    %236 = vector.load %arg5[%c0_74, %c0_75] : memref<128x128xf32, #tpu.memory_space<vmem>>, vector<128x128xf32>
    %cst_76 = arith.constant dense<0.000000e+00> : vector<8x128xf32>
    %237 = tpu.matmul %235, %236, %cst_76 {dimension_numbers = #tpu.dot_dimension_numbers<[1], [0], [0], [1], [0, 0, 1, 1], [], []>} : vector<8x128xf32>, vector<128x128xf32>, vector<8x128xf32> -> vector<8x128xf32>
    %c0_77 = arith.constant 0 : index
    %c0_78 = arith.constant 0 : index
    %238 = vector.load %arg6[%c0_77, %c0_78] : memref<1x128xf32, #tpu.memory_space<vmem>>, vector<1x128xf32>
    %239 = vector.broadcast %238 : vector<1x128xf32> to vector<8x128xf32>
    %240 = arith.addf %237, %239 : vector<8x128xf32>
    %c0_79 = arith.constant 0 : index
    %c0_80 = arith.constant 0 : index
    %241 = vector.load %arg7[%c0_79, %c0_80] : memref<8x128xf32, #tpu.memory_space<vmem>>, vector<8x128xf32>
    tpu.vector_store %arg7[%c0_79, %c0_80], %240 {strides = array<i32>} : memref<8x128xf32, #tpu.memory_space<vmem>>, vector<8x128xf32>,
    return
  }
  func.func @transform_0(%arg0: i32) -> (i32, i32) {
    %c0_i32 = arith.constant 0 : i32
    %c0_i32_0 = arith.constant 0 : i32
    return %arg0, %c0_i32 : i32, i32
  }
  func.func @transform_1(%arg0: i32) -> (i32, i32) {
    %c0_i32 = arith.constant 0 : i32
    %c0_i32_0 = arith.constant 0 : i32
    %c0_i32_1 = arith.constant 0 : i32
    return %c0_i32, %c0_i32_0 : i32, i32
  }
  func.func @transform_2(%arg0: i32) -> (i32, i32) {
    %c0_i32 = arith.constant 0 : i32
    %c0_i32_0 = arith.constant 0 : i32
    %c0_i32_1 = arith.constant 0 : i32
    return %c0_i32, %c0_i32_0 : i32, i32
  }
  func.func @transform_3(%arg0: i32) -> (i32, i32) {
    %c0_i32 = arith.constant 0 : i32
    %c0_i32_0 = arith.constant 0 : i32
    %c0_i32_1 = arith.constant 0 : i32
    return %c0_i32, %c0_i32_0 : i32, i32
  }
  func.func @transform_4(%arg0: i32) -> (i32, i32) {
    %c0_i32 = arith.constant 0 : i32
    %c0_i32_0 = arith.constant 0 : i32
    %c0_i32_1 = arith.constant 0 : i32
    return %c0_i32, %c0_i32_0 : i32, i32
  }
  func.func @transform_5(%arg0: i32) -> (i32, i32) {
    %c0_i32 = arith.constant 0 : i32
    %c0_i32_0 = arith.constant 0 : i32
    %c0_i32_1 = arith.constant 0 : i32
    return %c0_i32, %c0_i32_0 : i32, i32
  }
  func.func @transform_6(%arg0: i32) -> (i32, i32) {
    %c0_i32 = arith.constant 0 : i32
    %c0_i32_0 = arith.constant 0 : i32
    return %arg0, %c0_i32 : i32, i32
  }
}

</mosaic_0001>

<llo_original>
// kernel: fasttext_forward.1
$region0: #{fasttext_forward.1}
  #allocation0 [shape = 'u32[]', space=smem, size = 0x4, offset = 0x4, fixed_abs, tag = 'smem constant byte address 0x4 - core index']
  #allocation1 [shape = 'u32[144,128]{1,0:T(1,128)}', space=vmem, size = 0x12000, scoped, tag = 'internal scratch']
  %s0 = inlined_call_operand.vmem [shape: s32[32,32], index: 0, kind: input, shape index: {}]
  %s1 = inlined_call_operand.hbm [shape: f32[512,128], index: 1, kind: input, shape index: {}]
  %s2 = inlined_call_operand.hbm [shape: f32[128,128], index: 2, kind: input, shape index: {}]
  %s3 = inlined_call_operand.vmem [shape: f32[1,128], index: 3, kind: input, shape index: {}]
  %s4 = inlined_call_operand.hbm [shape: f32[128,128], index: 4, kind: input, shape index: {}]
  %s5 = inlined_call_operand.vmem [shape: f32[1,128], index: 5, kind: input, shape index: {}]
  %s6 = inlined_call_operand.vmem [shape: f32[32,128], index: 6, kind: output, shape index: {}]
  %s7 = sld [smem:[#allocation0]]
  $region69: #{fasttext_forward.1} parent=0
    _
  %s9 = ssub.s32 1, %s7
  %s10 = scalar_select 0, %s9, %s7
  $region1: #{fasttext_forward.1} parent=0
    #allocation2 [shape = 'u8[262144]{0}', space=vmem, size = 0x40000, scoped, tag = 'input window, operand 1, single buffered']
    #allocation3 [shape = 's32[2]{0}', space=sflag, size = 0x8, scoped, tag = 'scoped memory for fasttext_forward.1']
    #allocation4 [shape = 'u8[65536]{0}', space=vmem, size = 0x10000, scoped, tag = 'input window, operand 2, single buffered']
    #allocation5 [shape = 's32[1]{0}', space=sflag, size = 0x4, scoped, tag = 'scoped memory for fasttext_forward.1']
    #allocation6 [shape = 'u8[65536]{0}', space=vmem, size = 0x10000, scoped, tag = 'input window, operand 4, single buffered']
    %11 = vsyncpa [#allocation3], 0
    %12 = vsyncpa [#allocation5], 0
    loop: start=0, step=1, limit=6
    $region2: #{fasttext_forward.1} parent=1 // loop_pre_header
      _
    $region3: #{fasttext_forward.1} parent=1 // loop_header
      %s14 = sphi 0, %s18
      %p15 = scmp.ge.s32.totalorder %s14, 6
      %s24 = sphi 0, %s26
      %s27 = sphi 0, %s24
      %s28 = sphi 0, %s27
      %s44 = sphi 0, %s28
      %s48 = sphi 0, %s48
      %s50 = sphi 0, %s48
      %s51 = sphi 0, %s50
      %s65 = sphi 0, %s51
      %s69 = sphi 0, %s69
      %s71 = sphi 0, %s69
      %s72 = sphi 0, %s71
      %s86 = sphi 0, %s72
      %s90 = sphi 0, %s90
      %s92 = sphi 0, %s90
      %s93 = sphi 0, %s92
      %s107 = sphi 0, %s93
      %s111 = sphi 0, %s111
      %s113 = sphi 0, %s111
      %s114 = sphi 0, %s113
      %s128 = sphi 0, %s114
      %s132 = sphi 0, %s132
      %s134 = sphi 0, %s132
      %s135 = sphi 0, %s134
      %s149 = sphi 0, %s135
      %s155 = sphi 0, %s157
      %s158 = sphi 0, %s155
      %s159 = sphi 0, %s158
      %s175 = sphi 0, %s159
    $region4: #{fasttext_forward.1} parent=1 // loop_header_branch
      %17 = sbr.rel (%p15) target = $region8
    $region5: #{fasttext_forward.1} parent=1 // loop_body
      %s19 = ssub.s32 %s14, 1
      %s20 = ssub.s32 %s14, 2
      %s21 = sadd.s32 %s14, 1
      %s22 = ssub.s32 %s14, %s21
      %p23 = scmp.eq.s32.totalorder %s22, 0
      %s25 = sadd.s32 %s24, 1
      %s26 = scalar_select %p23, %s24, %s25
      %p29 = pneg %p23
      %p30 = scmp.eq.s32.totalorder %s14, 3
      %p31 = por %p29, %p30
      %p32 = scmp.ne.s32.totalorder %s24, %s27
      %p33 = scmp.eq.s32.totalorder %s14, 0
      %p34 = por %p32, %p33
      %p35 = scmp.ne.s32.totalorder %s24, %s27
      %p36 = scmp.eq.s32.totalorder %s19, 3
      %p37 = por %p35, %p36
      %p38 = scmp.ne.s32.totalorder %s27, %s28
      %p39 = scmp.eq.s32.totalorder %s19, 0
      %p40 = por %p38, %p39
      %p41 = scmp.ne.s32.totalorder %s27, %s28
      %p42 = scmp.eq.s32.totalorder %s20, 3
      %p43 = por %p41, %p42
      %p45 = scmp.ne.s32.totalorder %s28, %s44
      %p46 = scmp.eq.s32.totalorder %s20, 0
      %p47 = por %p45, %p46
      %s49 = sadd.s32 %s48, 1
      %p52 = scmp.eq.s32.totalorder %s14, 3
      %p53 = scmp.ne.s32.totalorder %s48, %s50
      %p54 = scmp.eq.s32.totalorder %s14, 0
      %p55 = por %p53, %p54
      %p56 = scmp.ne.s32.totalorder %s48, %s50
      %p57 = scmp.eq.s32.totalorder %s19, 3
      %p58 = por %p56, %p57
      %p59 = scmp.ne.s32.totalorder %s50, %s51
      %p60 = scmp.eq.s32.totalorder %s19, 0
      %p61 = por %p59, %p60
      %p62 = scmp.ne.s32.totalorder %s50, %s51
      %p63 = scmp.eq.s32.totalorder %s20, 3
      %p64 = por %p62, %p63
      %p66 = scmp.ne.s32.totalorder %s51, %s65
      %p67 = scmp.eq.s32.totalorder %s20, 0
      %p68 = por %p66, %p67
      %s70 = sadd.s32 %s69, 1
      %p73 = scmp.eq.s32.totalorder %s14, 3
      %p74 = scmp.ne.s32.totalorder %s69, %s71
      %p75 = scmp.eq.s32.totalorder %s14, 0
      %p76 = por %p74, %p75
      %p77 = scmp.ne.s32.totalorder %s69, %s71
      %p78 = scmp.eq.s32.totalorder %s19, 3
      %p79 = por %p77, %p78
      %p80 = scmp.ne.s32.totalorder %s71, %s72
      %p81 = scmp.eq.s32.totalorder %s19, 0
      %p82 = por %p80, %p81
      %p83 = scmp.ne.s32.totalorder %s71, %s72
      %p84 = scmp.eq.s32.totalorder %s20, 3
      %p85 = por %p83, %p84
      %p87 = scmp.ne.s32.totalorder %s72, %s86
      %p88 = scmp.eq.s32.totalorder %s20, 0
      %p89 = por %p87, %p88
      %s91 = sadd.s32 %s90, 1
      %p94 = scmp.eq.s32.totalorder %s14, 3
      %p95 = scmp.ne.s32.totalorder %s90, %s92
      %p96 = scmp.eq.s32.totalorder %s14, 0
      %p97 = por %p95, %p96
      %p98 = scmp.ne.s32.totalorder %s90, %s92
      %p99 = scmp.eq.s32.totalorder %s19, 3
      %p100 = por %p98, %p99
      %p101 = scmp.ne.s32.totalorder %s92, %s93
      %p102 = scmp.eq.s32.totalorder %s19, 0
      %p103 = por %p101, %p102
      %p104 = scmp.ne.s32.totalorder %s92, %s93
      %p105 = scmp.eq.s32.totalorder %s20, 3
      %p106 = por %p104, %p105
      %p108 = scmp.ne.s32.totalorder %s93, %s107
      %p109 = scmp.eq.s32.totalorder %s20, 0
      %p110 = por %p108, %p109
      %s112 = sadd.s32 %s111, 1
      %p115 = scmp.eq.s32.totalorder %s14, 3
      %p116 = scmp.ne.s32.totalorder %s111, %s113
      %p117 = scmp.eq.s32.totalorder %s14, 0
      %p118 = por %p116, %p117
      %p119 = scmp.ne.s32.totalorder %s111, %s113
      %p120 = scmp.eq.s32.totalorder %s19, 3
      %p121 = por %p119, %p120
      %p122 = scmp.ne.s32.totalorder %s113, %s114
      %p123 = scmp.eq.s32.totalorder %s19, 0
      %p124 = por %p122, %p123
      %p125 = scmp.ne.s32.totalorder %s113, %s114
      %p126 = scmp.eq.s32.totalorder %s20, 3
      %p127 = por %p125, %p126
      %p129 = scmp.ne.s32.totalorder %s114, %s128
      %p130 = scmp.eq.s32.totalorder %s20, 0
      %p131 = por %p129, %p130
      %s133 = sadd.s32 %s132, 1
      %p136 = scmp.eq.s32.totalorder %s14, 3
      %p137 = scmp.ne.s32.totalorder %s132, %s134
      %p138 = scmp.eq.s32.totalorder %s14, 0
      %p139 = por %p137, %p138
      %p140 = scmp.ne.s32.totalorder %s132, %s134
      %p141 = scmp.eq.s32.totalorder %s19, 3
      %p142 = por %p140, %p141
      %p143 = scmp.ne.s32.totalorder %s134, %s135
      %p144 = scmp.eq.s32.totalorder %s19, 0
      %p145 = por %p143, %p144
      %p146 = scmp.ne.s32.totalorder %s134, %s135
      %p147 = scmp.eq.s32.totalorder %s20, 3
      %p148 = por %p146, %p147
      %p150 = scmp.ne.s32.totalorder %s135, %s149
      %p151 = scmp.eq.s32.totalorder %s20, 0
      %p152 = por %p150, %p151
      %s153 = ssub.s32 %s14, %s21
      %p154 = scmp.eq.s32.totalorder %s153, 0
      %s156 = sadd.s32 %s155, 1
      %s157 = scalar_select %p154, %s155, %s156
      %p160 = pneg %p154
      %p161 = scmp.eq.s32.totalorder %s14, 3
      %p162 = por %p160, %p161
      %p163 = scmp.ne.s32.totalorder %s155, %s158
      %p164 = scmp.eq.s32.totalorder %s14, 0
      %p165 = por %p163, %p164
      %p166 = scmp.ne.s32.totalorder %s155, %s158
      %p167 = scmp.eq.s32.totalorder %s19, 3
      %p168 = por %p166, %p167
      %p169 = scmp.ne.s32.totalorder %s158, %s159
      %p170 = scmp.eq.s32.totalorder %s19, 0
      %p171 = por %p169, %p170
      %p172 = scmp.ne.s32.totalorder %s158, %s159
      %p173 = scmp.eq.s32.totalorder %s20, 3
      %p174 = por %p172, %p173
      %p176 = scmp.ne.s32.totalorder %s159, %s175
      %p177 = scmp.eq.s32.totalorder %s20, 0
      %p178 = por %p176, %p177
      %p179 = scmp.le.s32.totalorder 1, %s14
      %p180 = scmp.lt.s32.totalorder %s14, 5
      %p181 = pnand %p179, %p180
      %p182 = pneg %p181
      // Predicated region
      $region9: #{fasttext_forward.1} parent=5 // pred_check
        _
      $region10: #{fasttext_forward.1} parent=5 // pred_check_branch
        %184 = sbr.rel (%p181) target = $region12
      $region11: #{fasttext_forward.1} parent=5 // pred_region
        %s185 = ssub.s32 %s14, 1
        // Predicated region
        $region13: #{fasttext_forward.1} parent=11 // pred_check
          %p186 = pneg %p61
        $region14: #{fasttext_forward.1} parent=11 // pred_check_branch
          %188 = sbr.rel (%p186) target = $region16
        $region15: #{fasttext_forward.1} parent=11 // pred_region
          %s190 = ssub.s32 8192, 8192
          %191 = vsyncadd [#allocation3], %s190
          %s192 = sshll.u32 [#allocation2], 4
          %s193 = int_to_ptr.vmem [resolvable:$true] %s192
          %198 = dma.hbm_to_vmem [thread:$0]  %s1, 8192, %s193, [#allocation3], 128, 128, 8
        $region16: #{fasttext_forward.1} parent=11 // pred_fallthru
          _
        // Predicated region
        $region17: #{fasttext_forward.1} parent=11 // pred_check
          %p199 = pneg %p82
        $region18: #{fasttext_forward.1} parent=11 // pred_check_branch
          %201 = sbr.rel (%p199) target = $region20
        $region19: #{fasttext_forward.1} parent=11 // pred_region
          %s203 = ssub.s32 2048, 2048
          %204 = vsyncadd [#allocation5], %s203
          %s205 = sshll.u32 [#allocation4], 4
          %s206 = int_to_ptr.vmem [resolvable:$true] %s205
          %211 = dma.hbm_to_vmem [thread:$0]  %s2, 2048, %s206, [#allocation5], 128, 128, 8
        $region20: #{fasttext_forward.1} parent=11 // pred_fallthru
          _
        // Predicated region
        $region21: #{fasttext_forward.1} parent=11 // pred_check
          %p212 = pneg %p103
        $region22: #{fasttext_forward.1} parent=11 // pred_check_branch
          %214 = sbr.rel (%p212) target = $region24
        $region23: #{fasttext_forward.1} parent=11 // pred_region
          _
        $region24: #{fasttext_forward.1} parent=11 // pred_fallthru
          _
        // Predicated region
        $region25: #{fasttext_forward.1} parent=11 // pred_check
          %p215 = pneg %p124
        $region26: #{fasttext_forward.1} parent=11 // pred_check_branch
          %217 = sbr.rel (%p215) target = $region28
        $region27: #{fasttext_forward.1} parent=11 // pred_region
          %s219 = ssub.s32 2048, 2048
          %220 = vsyncadd [#allocation5], %s219
          %s221 = sshll.u32 [#allocation6], 4
          %s222 = int_to_ptr.vmem [resolvable:$true] %s221
          %227 = dma.hbm_to_vmem [thread:$0]  %s4, 2048, %s222, [#allocation5], 128, 128, 8
        $region28: #{fasttext_forward.1} parent=11 // pred_fallthru
          _
        // Predicated region
        $region29: #{fasttext_forward.1} parent=11 // pred_check
          %p228 = pneg %p145
        $region30: #{fasttext_forward.1} parent=11 // pred_check_branch
          %230 = sbr.rel (%p228) target = $region32
        $region31: #{fasttext_forward.1} parent=11 // pred_region
          _
        $region32: #{fasttext_forward.1} parent=11 // pred_fallthru
          _
      $region12: #{fasttext_forward.1} parent=5 // pred_fallthru
        _
      %p231 = scmp.lt.s32.totalorder %s14, 4
      // Predicated region
      $region33: #{fasttext_forward.1} parent=5 // pred_check
        %p232 = pneg %p231
      $region34: #{fasttext_forward.1} parent=5 // pred_check_branch
        %234 = sbr.rel (%p232) target = $region36
      $region35: #{fasttext_forward.1} parent=5 // pred_region
        // Predicated region
        $region37: #{fasttext_forward.1} parent=35 // pred_check
          %p235 = pneg %p34
        $region38: #{fasttext_forward.1} parent=35 // pred_check_branch
          %237 = sbr.rel (%p235) target = $region40
        $region39: #{fasttext_forward.1} parent=35 // pred_region
          %p238 = scmp.lt.s32.totalorder %s14, 3
          %s239 = scalar_select %p238, %s14, 3
          %s240 = smul.addr %s239, 8
          %s241 = scalar_lea.vmem %s0, %s240
        $region40: #{fasttext_forward.1} parent=35 // pred_fallthru
          _
      $region36: #{fasttext_forward.1} parent=5 // pred_fallthru
        _
      %p242 = scmp.le.s32.totalorder 1, %s14
      %p243 = scmp.lt.s32.totalorder %s14, 5
      %p244 = pnand %p242, %p243
      %p245 = pneg %p244
      // Predicated region
      $region41: #{fasttext_forward.1} parent=5 // pred_check
        _
      $region42: #{fasttext_forward.1} parent=5 // pred_check_branch
        %247 = sbr.rel (%p244) target = $region44
      $region43: #{fasttext_forward.1} parent=5 // pred_region
        %s248 = ssub.s32 %s14, 1
        // Predicated region
        $region45: #{fasttext_forward.1} parent=43 // pred_check
          %p249 = pneg %p61
        $region46: #{fasttext_forward.1} parent=43 // pred_check_branch
          %251 = sbr.rel (%p249) target = $region48
        $region47: #{fasttext_forward.1} parent=43 // pred_region
          %252 = dma.done [#allocation3], 8192
        $region48: #{fasttext_forward.1} parent=43 // pred_fallthru
          _
        // Predicated region
        $region49: #{fasttext_forward.1} parent=43 // pred_check
          %p253 = pneg %p82
        $region50: #{fasttext_forward.1} parent=43 // pred_check_branch
          %255 = sbr.rel (%p253) target = $region52
        $region51: #{fasttext_forward.1} parent=43 // pred_region
          %256 = dma.done [#allocation5], 2048
        $region52: #{fasttext_forward.1} parent=43 // pred_fallthru
          _
        // Predicated region
        $region53: #{fasttext_forward.1} parent=43 // pred_check
          %p257 = pneg %p124
        $region54: #{fasttext_forward.1} parent=43 // pred_check_branch
          %259 = sbr.rel (%p257) target = $region56
        $region55: #{fasttext_forward.1} parent=43 // pred_region
          %260 = dma.done [#allocation5], 2048
        $region56: #{fasttext_forward.1} parent=43 // pred_fallthru
          _
        %p261 = scmp.lt.s32.totalorder %s19, 3
        %s262 = scalar_select %p261, %s19, 3
        %s263 = smul.addr %s262, 8
        %s264 = scalar_lea.vmem %s0, %s263
        %p265 = pneg %p40
        %p266 = pneg %p37
        %p267 = pneg %p61
        %p268 = pneg %p58
        %p269 = pneg %p82
        %p270 = pneg %p79
        %p271 = pneg %p103
        %p272 = pneg %p100
        %p273 = pneg %p124
        %p274 = pneg %p121
        %p275 = pneg %p145
        %p276 = pneg %p142
        %p277 = pneg %p171
        %p278 = pneg %p168
        %p279 = scmp.lt.s32.totalorder %s19, 3
        %s280 = scalar_select %p279, %s19, 3
        %s281 = smul.addr %s280, 8
        %s282 = scalar_lea.vmem %s6, %s281
        %p283 = scmp.lt.s32.totalorder %s19, 3
        %s284 = scalar_select %p283, %s19, 3
        %s285 = smul.addr %s284, 8
        %s286 = scalar_lea.vmem %s0, %s285
        %p287 = scmp.lt.s32.totalorder %s19, 3
        %s288 = scalar_select %p287, %s19, 3
        %s289 = smul.addr %s288, 8
        %s290 = scalar_lea.vmem %s6, %s289
        %v291 = vld [vmem:[%s286] sm:$0xff]
        %v292 = vld [vmem:[#allocation2] sm:$0xff]
        %v293 = vld [vmem:[#allocation2 + $0x8] sm:$0xff]
        %v294 = vld [vmem:[#allocation2 + $0x10] sm:$0xff]
        %v295 = vld [vmem:[#allocation2 + $0x18] sm:$0xff]
        %v296 = vld [vmem:[#allocation2 + $0x20] sm:$0xff]
        %v297 = vld [vmem:[#allocation2 + $0x28] sm:$0xff]
        %v298 = vld [vmem:[#allocation2 + $0x30] sm:$0xff]
        %v299 = vld [vmem:[#allocation2 + $0x38] sm:$0xff]
        %v300 = vld [vmem:[#allocation2 + $0x40] sm:$0xff]
        %v301 = vld [vmem:[#allocation2 + $0x48] sm:$0xff]
        %v302 = vld [vmem:[#allocation2 + $0x50] sm:$0xff]
        %v303 = vld [vmem:[#allocation2 + $0x58] sm:$0xff]
        %v304 = vld [vmem:[#allocation2 + $0x60] sm:$0xff]
        %v305 = vld [vmem:[#allocation2 + $0x68] sm:$0xff]
        %v306 = vld [vmem:[#allocation2 + $0x70] sm:$0xff]
        %v307 = vld [vmem:[#allocation2 + $0x78] sm:$0xff]
        %v308 = vld [vmem:[#allocation2 + $0x80] sm:$0xff]
        %v309 = vld [vmem:[#allocation2 + $0x88] sm:$0xff]
        %v310 = vld [vmem:[#allocation2 + $0x90] sm:$0xff]
        %v311 = vld [vmem:[#allocation2 + $0x98] sm:$0xff]
        %v312 = vld [vmem:[#allocation2 + $0xa0] sm:$0xff]
        %v313 = vld [vmem:[#allocation2 + $0xa8] sm:$0xff]
        %v314 = vld [vmem:[#allocation2 + $0xb0] sm:$0xff]
        %v315 = vld [vmem:[#allocation2 + $0xb8] sm:$0xff]
        %v316 = vld [vmem:[#allocation2 + $0xc0] sm:$0xff]
        %v317 = vld [vmem:[#allocation2 + $0xc8] sm:$0xff]
        %v318 = vld [vmem:[#allocation2 + $0xd0] sm:$0xff]
        %v319 = vld [vmem:[#allocation2 + $0xd8] sm:$0xff]
        %v320 = vld [vmem:[#allocation2 + $0xe0] sm:$0xff]
        %v321 = vld [vmem:[#allocation2 + $0xe8] sm:$0xff]
        %v322 = vld [vmem:[#allocation2 + $0xf0] sm:$0xff]
        %v323 = vld [vmem:[#allocation2 + $0xf8] sm:$0xff]
        %v324 = vld [vmem:[#allocation2 + $0x100] sm:$0xff]
        %v325 = vld [vmem:[#allocation2 + $0x108] sm:$0xff]
        %v326 = vld [vmem:[#allocation2 + $0x110] sm:$0xff]
        %v327 = vld [vmem:[#allocation2 + $0x118] sm:$0xff]
        %v328 = vld [vmem:[#allocation2 + $0x120] sm:$0xff]
        %v329 = vld [vmem:[#allocation2 + $0x128] sm:$0xff]
        %v330 = vld [vmem:[#allocation2 + $0x130] sm:$0xff]
        %v331 = vld [vmem:[#allocation2 + $0x138] sm:$0xff]
        %v332 = vld [vmem:[#allocation2 + $0x140] sm:$0xff]
        %v333 = vld [vmem:[#allocation2 + $0x148] sm:$0xff]
        %v334 = vld [vmem:[#allocation2 + $0x150] sm:$0xff]
        %v335 = vld [vmem:[#allocation2 + $0x158] sm:$0xff]
        %v336 = vld [vmem:[#allocation2 + $0x160] sm:$0xff]
        %v337 = vld [vmem:[#allocation2 + $0x168] sm:$0xff]
        %v338 = vld [vmem:[#allocation2 + $0x170] sm:$0xff]
        %v339 = vld [vmem:[#allocation2 + $0x178] sm:$0xff]
        %v340 = vld [vmem:[#allocation2 + $0x180] sm:$0xff]
        %v341 = vld [vmem:[#allocation2 + $0x188] sm:$0xff]
        %v342 = vld [vmem:[#allocation2 + $0x190] sm:$0xff]
        %v343 = vld [vmem:[#allocation2 + $0x198] sm:$0xff]
        %v344 = vld [vmem:[#allocation2 + $0x1a0] sm:$0xff]
        %v345 = vld [vmem:[#allocation2 + $0x1a8] sm:$0xff]
        %v346 = vld [vmem:[#allocation2 + $0x1b0] sm:$0xff]
        %v347 = vld [vmem:[#allocation2 + $0x1b8] sm:$0xff]
        %v348 = vld [vmem:[#allocation2 + $0x1c0] sm:$0xff]
        %v349 = vld [vmem:[#allocation2 + $0x1c8] sm:$0xff]
        %v350 = vld [vmem:[#allocation2 + $0x1d0] sm:$0xff]
        %v351 = vld [vmem:[#allocation2 + $0x1d8] sm:$0xff]
        %v352 = vld [vmem:[#allocation2 + $0x1e0] sm:$0xff]
        %v353 = vld [vmem:[#allocation2 + $0x1e8] sm:$0xff]
        %v354 = vld [vmem:[#allocation2 + $0x1f0] sm:$0xff]
        %v355 = vld [vmem:[#allocation2 + $0x1f8] sm:$0xff]
        %v356 = vlaneseq
        %v357 = vand.u32 %v356, 127
        %v358 = vadd.s32 %v357, 128
        %v359 = vadd.s32 %v357, 256
        %v360 = vadd.s32 %v357, 384
        %361 = vset.pattern.permute.xlu0 0
        %362 = vperm.xlu0 %361, %v291
        %v363 = vpop.permute.xlu0 %362
        %vm364 = vcmp.eq.s32.totalorder %v363, %v357
        %vm365 = vcmp.eq.s32.totalorder %v363, %v358
        %vm366 = vcmp.eq.s32.totalorder %v363, %v359
        %vm367 = vcmp.eq.s32.totalorder %v363, %v360
        %v368 = vsel %vm364, 1.0, 0.0
        %v369 = vsel %vm365, 1.0, 0.0
        %v370 = vsel %vm366, 1.0, 0.0
        %v371 = vsel %vm367, 1.0, 0.0
        %v372 = vadd.f32 %v368, 0.0
        %v373 = vadd.f32 %v369, 0.0
        %v374 = vadd.f32 %v370, 0.0
        %v375 = vadd.f32 %v371, 0.0
        %376 = vset.pattern.permute.xlu0 1
        %377 = vperm.xlu0 %376, %v291
        %v378 = vpop.permute.xlu0 %377
        %vm379 = vcmp.eq.s32.totalorder %v378, %v357
        %vm380 = vcmp.eq.s32.totalorder %v378, %v358
        %vm381 = vcmp.eq.s32.totalorder %v378, %v359
        %vm382 = vcmp.eq.s32.totalorder %v378, %v360
        %v383 = vsel %vm379, 1.0, 0.0
        %v384 = vsel %vm380, 1.0, 0.0
        %v385 = vsel %vm381, 1.0, 0.0
        %v386 = vsel %vm382, 1.0, 0.0
        %v387 = vadd.f32 %v372, %v383
        %v388 = vadd.f32 %v373, %v384
        %v389 = vadd.f32 %v374, %v385
        %v390 = vadd.f32 %v375, %v386
        %391 = vset.pattern.permute.xlu0 2
        %392 = vperm.xlu0 %391, %v291
        %v393 = vpop.permute.xlu0 %392
        %vm394 = vcmp.eq.s32.totalorder %v393, %v357
        %vm395 = vcmp.eq.s32.totalorder %v393, %v358
        %vm396 = vcmp.eq.s32.totalorder %v393, %v359
        %vm397 = vcmp.eq.s32.totalorder %v393, %v360
        %v398 = vsel %vm394, 1.0, 0.0
        %v399 = vsel %vm395, 1.0, 0.0
        %v400 = vsel %vm396, 1.0, 0.0
        %v401 = vsel %vm397, 1.0, 0.0
        %v402 = vadd.f32 %v387, %v398
        %v403 = vadd.f32 %v388, %v399
        %v404 = vadd.f32 %v389, %v400
        %v405 = vadd.f32 %v390, %v401
        %406 = vset.pattern.permute.xlu0 3
        %407 = vperm.xlu0 %406, %v291
        %v408 = vpop.permute.xlu0 %407
        %vm409 = vcmp.eq.s32.totalorder %v408, %v357
        %vm410 = vcmp.eq.s32.totalorder %v408, %v358
        %vm411 = vcmp.eq.s32.totalorder %v408, %v359
        %vm412 = vcmp.eq.s32.totalorder %v408, %v360
        %v413 = vsel %vm409, 1.0, 0.0
        %v414 = vsel %vm410, 1.0, 0.0
        %v415 = vsel %vm411, 1.0, 0.0
        %v416 = vsel %vm412, 1.0, 0.0
        %v417 = vadd.f32 %v402, %v413
        %v418 = vadd.f32 %v403, %v414
        %v419 = vadd.f32 %v404, %v415
        %v420 = vadd.f32 %v405, %v416
        %421 = vset.pattern.permute.xlu0 4
        %422 = vperm.xlu0 %421, %v291
        %v423 = vpop.permute.xlu0 %422
        %vm424 = vcmp.eq.s32.totalorder %v423, %v357
        %vm425 = vcmp.eq.s32.totalorder %v423, %v358
        %vm426 = vcmp.eq.s32.totalorder %v423, %v359
        %vm427 = vcmp.eq.s32.totalorder %v423, %v360
        %v428 = vsel %vm424, 1.0, 0.0
        %v429 = vsel %vm425, 1.0, 0.0
        %v430 = vsel %vm426, 1.0, 0.0
        %v431 = vsel %vm427, 1.0, 0.0
        %v432 = vadd.f32 %v417, %v428
        %v433 = vadd.f32 %v418, %v429
        %v434 = vadd.f32 %v419, %v430
        %v435 = vadd.f32 %v420, %v431
        %436 = vset.pattern.permute.xlu0 5
        %437 = vperm.xlu0 %436, %v291
        %v438 = vpop.permute.xlu0 %437
        %vm439 = vcmp.eq.s32.totalorder %v438, %v357
        %vm440 = vcmp.eq.s32.totalorder %v438, %v358
        %vm441 = vcmp.eq.s32.totalorder %v438, %v359
        %vm442 = vcmp.eq.s32.totalorder %v438, %v360
        %v443 = vsel %vm439, 1.0, 0.0
        %v444 = vsel %vm440, 1.0, 0.0
        %v445 = vsel %vm441, 1.0, 0.0
        %v446 = vsel %vm442, 1.0, 0.0
        %v447 = vadd.f32 %v432, %v443
        %v448 = vadd.f32 %v433, %v444
        %v449 = vadd.f32 %v434, %v445
        %v450 = vadd.f32 %v435, %v446
        %451 = vset.pattern.permute.xlu0 6
        %452 = vperm.xlu0 %451, %v291
        %v453 = vpop.permute.xlu0 %452
        %vm454 = vcmp.eq.s32.totalorder %v453, %v357
        %vm455 = vcmp.eq.s32.totalorder %v453, %v358
        %vm456 = vcmp.eq.s32.totalorder %v453, %v359
        %vm457 = vcmp.eq.s32.totalorder %v453, %v360
        %v458 = vsel %vm454, 1.0, 0.0
        %v459 = vsel %vm455, 1.0, 0.0
        %v460 = vsel %vm456, 1.0, 0.0
        %v461 = vsel %vm457, 1.0, 0.0
        %v462 = vadd.f32 %v447, %v458
        %v463 = vadd.f32 %v448, %v459
        %v464 = vadd.f32 %v449, %v460
        %v465 = vadd.f32 %v450, %v461
        %466 = vset.pattern.permute.xlu0 7
        %467 = vperm.xlu0 %466, %v291
        %v468 = vpop.permute.xlu0 %467
        %vm469 = vcmp.eq.s32.totalorder %v468, %v357
        %vm470 = vcmp.eq.s32.totalorder %v468, %v358
        %vm471 = vcmp.eq.s32.totalorder %v468, %v359
        %vm472 = vcmp.eq.s32.totalorder %v468, %v360
        %v473 = vsel %vm469, 1.0, 0.0
        %v474 = vsel %vm470, 1.0, 0.0
        %v475 = vsel %vm471, 1.0, 0.0
        %v476 = vsel %vm472, 1.0, 0.0
        %v477 = vadd.f32 %v462, %v473
        %v478 = vadd.f32 %v463, %v474
        %v479 = vadd.f32 %v464, %v475
        %v480 = vadd.f32 %v465, %v476
        %481 = vset.pattern.permute.xlu0 8
        %482 = vperm.xlu0 %481, %v291
        %v483 = vpop.permute.xlu0 %482
        %vm484 = vcmp.eq.s32.totalorder %v483, %v357
        %vm485 = vcmp.eq.s32.totalorder %v483, %v358
        %vm486 = vcmp.eq.s32.totalorder %v483, %v359
        %vm487 = vcmp.eq.s32.totalorder %v483, %v360
        %v488 = vsel %vm484, 1.0, 0.0
        %v489 = vsel %vm485, 1.0, 0.0
        %v490 = vsel %vm486, 1.0, 0.0
        %v491 = vsel %vm487, 1.0, 0.0
        %v492 = vadd.f32 %v477, %v488
        %v493 = vadd.f32 %v478, %v489
        %v494 = vadd.f32 %v479, %v490
        %v495 = vadd.f32 %v480, %v491
        %496 = vset.pattern.permute.xlu0 9
        %497 = vperm.xlu0 %496, %v291
        %v498 = vpop.permute.xlu0 %497
        %vm499 = vcmp.eq.s32.totalorder %v498, %v357
        %vm500 = vcmp.eq.s32.totalorder %v498, %v358
        %vm501 = vcmp.eq.s32.totalorder %v498, %v359
        %vm502 = vcmp.eq.s32.totalorder %v498, %v360
        %v503 = vsel %vm499, 1.0, 0.0
        %v504 = vsel %vm500, 1.0, 0.0
        %v505 = vsel %vm501, 1.0, 0.0
        %v506 = vsel %vm502, 1.0, 0.0
        %v507 = vadd.f32 %v492, %v503
        %v508 = vadd.f32 %v493, %v504
        %v509 = vadd.f32 %v494, %v505
        %v510 = vadd.f32 %v495, %v506
        %511 = vset.pattern.permute.xlu0 10
        %512 = vperm.xlu0 %511, %v291
        %v513 = vpop.permute.xlu0 %512
        %vm514 = vcmp.eq.s32.totalorder %v513, %v357
        %vm515 = vcmp.eq.s32.totalorder %v513, %v358
        %vm516 = vcmp.eq.s32.totalorder %v513, %v359
        %vm517 = vcmp.eq.s32.totalorder %v513, %v360
        %v518 = vsel %vm514, 1.0, 0.0
        %v519 = vsel %vm515, 1.0, 0.0
        %v520 = vsel %vm516, 1.0, 0.0
        %v521 = vsel %vm517, 1.0, 0.0
        %v522 = vadd.f32 %v507, %v518
        %v523 = vadd.f32 %v508, %v519
        %v524 = vadd.f32 %v509, %v520
        %v525 = vadd.f32 %v510, %v521
        %526 = vset.pattern.permute.xlu0 11
        %527 = vperm.xlu0 %526, %v291
        %v528 = vpop.permute.xlu0 %527
        %vm529 = vcmp.eq.s32.totalorder %v528, %v357
        %vm530 = vcmp.eq.s32.totalorder %v528, %v358
        %vm531 = vcmp.eq.s32.totalorder %v528, %v359
        %vm532 = vcmp.eq.s32.totalorder %v528, %v360
        %v533 = vsel %vm529, 1.0, 0.0
        %v534 = vsel %vm530, 1.0, 0.0
        %v535 = vsel %vm531, 1.0, 0.0
        %v536 = vsel %vm532, 1.0, 0.0
        %v537 = vadd.f32 %v522, %v533
        %v538 = vadd.f32 %v523, %v534
        %v539 = vadd.f32 %v524, %v535
        %v540 = vadd.f32 %v525, %v536
        %541 = vset.pattern.permute.xlu0 12
        %542 = vperm.xlu0 %541, %v291
        %v543 = vpop.permute.xlu0 %542
        %vm544 = vcmp.eq.s32.totalorder %v543, %v357
        %vm545 = vcmp.eq.s32.totalorder %v543, %v358
        %vm546 = vcmp.eq.s32.totalorder %v543, %v359
        %vm547 = vcmp.eq.s32.totalorder %v543, %v360
        %v548 = vsel %vm544, 1.0, 0.0
        %v549 = vsel %vm545, 1.0, 0.0
        %v550 = vsel %vm546, 1.0, 0.0
        %v551 = vsel %vm547, 1.0, 0.0
        %v552 = vadd.f32 %v537, %v548
        %v553 = vadd.f32 %v538, %v549
        %v554 = vadd.f32 %v539, %v550
        %v555 = vadd.f32 %v540, %v551
        %556 = vset.pattern.permute.xlu0 13
        %557 = vperm.xlu0 %556, %v291
        %v558 = vpop.permute.xlu0 %557
        %vm559 = vcmp.eq.s32.totalorder %v558, %v357
        %vm560 = vcmp.eq.s32.totalorder %v558, %v358
        %vm561 = vcmp.eq.s32.totalorder %v558, %v359
        %vm562 = vcmp.eq.s32.totalorder %v558, %v360
        %v563 = vsel %vm559, 1.0, 0.0
        %v564 = vsel %vm560, 1.0, 0.0
        %v565 = vsel %vm561, 1.0, 0.0
        %v566 = vsel %vm562, 1.0, 0.0
        %v567 = vadd.f32 %v552, %v563
        %v568 = vadd.f32 %v553, %v564
        %v569 = vadd.f32 %v554, %v565
        %v570 = vadd.f32 %v555, %v566
        %571 = vset.pattern.permute.xlu0 14
        %572 = vperm.xlu0 %571, %v291
        %v573 = vpop.permute.xlu0 %572
        %vm574 = vcmp.eq.s32.totalorder %v573, %v357
        %vm575 = vcmp.eq.s32.totalorder %v573, %v358
        %vm576 = vcmp.eq.s32.totalorder %v573, %v359
        %vm577 = vcmp.eq.s32.totalorder %v573, %v360
        %v578 = vsel %vm574, 1.0, 0.0
        %v579 = vsel %vm575, 1.0, 0.0
        %v580 = vsel %vm576, 1.0, 0.0
        %v581 = vsel %vm577, 1.0, 0.0
        %v582 = vadd.f32 %v567, %v578
        %v583 = vadd.f32 %v568, %v579
        %v584 = vadd.f32 %v569, %v580
        %v585 = vadd.f32 %v570, %v581
        %586 = vset.pattern.permute.xlu0 15
        %587 = vperm.xlu0 %586, %v291
        %v588 = vpop.permute.xlu0 %587
        %vm589 = vcmp.eq.s32.totalorder %v588, %v357
        %vm590 = vcmp.eq.s32.totalorder %v588, %v358
        %vm591 = vcmp.eq.s32.totalorder %v588, %v359
        %vm592 = vcmp.eq.s32.totalorder %v588, %v360
        %v593 = vsel %vm589, 1.0, 0.0
        %v594 = vsel %vm590, 1.0, 0.0
        %v595 = vsel %vm591, 1.0, 0.0
        %v596 = vsel %vm592, 1.0, 0.0
        %v597 = vadd.f32 %v582, %v593
        %v598 = vadd.f32 %v583, %v594
        %v599 = vadd.f32 %v584, %v595
        %v600 = vadd.f32 %v585, %v596
        %601 = vset.pattern.permute.xlu0 16
        %602 = vperm.xlu0 %601, %v291
        %v603 = vpop.permute.xlu0 %602
        %vm604 = vcmp.eq.s32.totalorder %v603, %v357
        %vm605 = vcmp.eq.s32.totalorder %v603, %v358
        %vm606 = vcmp.eq.s32.totalorder %v603, %v359
        %vm607 = vcmp.eq.s32.totalorder %v603, %v360
        %v608 = vsel %vm604, 1.0, 0.0
        %v609 = vsel %vm605, 1.0, 0.0
        %v610 = vsel %vm606, 1.0, 0.0
        %v611 = vsel %vm607, 1.0, 0.0
        %v612 = vadd.f32 %v597, %v608
        %v613 = vadd.f32 %v598, %v609
        %v614 = vadd.f32 %v599, %v610
        %v615 = vadd.f32 %v600, %v611
        %616 = vset.pattern.permute.xlu0 17
        %617 = vperm.xlu0 %616, %v291
        %v618 = vpop.permute.xlu0 %617
        %vm619 = vcmp.eq.s32.totalorder %v618, %v357
        %vm620 = vcmp.eq.s32.totalorder %v618, %v358
        %vm621 = vcmp.eq.s32.totalorder %v618, %v359
        %vm622 = vcmp.eq.s32.totalorder %v618, %v360
        %v623 = vsel %vm619, 1.0, 0.0
        %v624 = vsel %vm620, 1.0, 0.0
        %v625 = vsel %vm621, 1.0, 0.0
        %v626 = vsel %vm622, 1.0, 0.0
        %v627 = vadd.f32 %v612, %v623
        %v628 = vadd.f32 %v613, %v624
        %v629 = vadd.f32 %v614, %v625
        %v630 = vadd.f32 %v615, %v626
        %631 = vset.pattern.permute.xlu0 18
        %632 = vperm.xlu0 %631, %v291
        %v633 = vpop.permute.xlu0 %632
        %vm634 = vcmp.eq.s32.totalorder %v633, %v357
        %vm635 = vcmp.eq.s32.totalorder %v633, %v358
        %vm636 = vcmp.eq.s32.totalorder %v633, %v359
        %vm637 = vcmp.eq.s32.totalorder %v633, %v360
        %v638 = vsel %vm634, 1.0, 0.0
        %v639 = vsel %vm635, 1.0, 0.0
        %v640 = vsel %vm636, 1.0, 0.0
        %v641 = vsel %vm637, 1.0, 0.0
        %v642 = vadd.f32 %v627, %v638
        %v643 = vadd.f32 %v628, %v639
        %v644 = vadd.f32 %v629, %v640
        %v645 = vadd.f32 %v630, %v641
        %646 = vset.pattern.permute.xlu0 19
        %647 = vperm.xlu0 %646, %v291
        %v648 = vpop.permute.xlu0 %647
        %vm649 = vcmp.eq.s32.totalorder %v648, %v357
        %vm650 = vcmp.eq.s32.totalorder %v648, %v358
        %vm651 = vcmp.eq.s32.totalorder %v648, %v359
        %vm652 = vcmp.eq.s32.totalorder %v648, %v360
        %v653 = vsel %vm649, 1.0, 0.0
        %v654 = vsel %vm650, 1.0, 0.0
        %v655 = vsel %vm651, 1.0, 0.0
        %v656 = vsel %vm652, 1.0, 0.0
        %v657 = vadd.f32 %v642, %v653
        %v658 = vadd.f32 %v643, %v654
        %v659 = vadd.f32 %v644, %v655
        %v660 = vadd.f32 %v645, %v656
        %661 = vset.pattern.permute.xlu0 20
        %662 = vperm.xlu0 %661, %v291
        %v663 = vpop.permute.xlu0 %662
        %vm664 = vcmp.eq.s32.totalorder %v663, %v357
        %vm665 = vcmp.eq.s32.totalorder %v663, %v358
        %vm666 = vcmp.eq.s32.totalorder %v663, %v359
        %vm667 = vcmp.eq.s32.totalorder %v663, %v360
        %v668 = vsel %vm664, 1.0, 0.0
        %v669 = vsel %vm665, 1.0, 0.0
        %v670 = vsel %vm666, 1.0, 0.0
        %v671 = vsel %vm667, 1.0, 0.0
        %v672 = vadd.f32 %v657, %v668
        %v673 = vadd.f32 %v658, %v669
        %v674 = vadd.f32 %v659, %v670
        %v675 = vadd.f32 %v660, %v671
        %676 = vset.pattern.permute.xlu0 21
        %677 = vperm.xlu0 %676, %v291
        %v678 = vpop.permute.xlu0 %677
        %vm679 = vcmp.eq.s32.totalorder %v678, %v357
        %vm680 = vcmp.eq.s32.totalorder %v678, %v358
        %vm681 = vcmp.eq.s32.totalorder %v678, %v359
        %vm682 = vcmp.eq.s32.totalorder %v678, %v360
        %v683 = vsel %vm679, 1.0, 0.0
        %v684 = vsel %vm680, 1.0, 0.0
        %v685 = vsel %vm681, 1.0, 0.0
        %v686 = vsel %vm682, 1.0, 0.0
        %v687 = vadd.f32 %v672, %v683
        %v688 = vadd.f32 %v673, %v684
        %v689 = vadd.f32 %v674, %v685
        %v690 = vadd.f32 %v675, %v686
        %691 = vset.pattern.permute.xlu0 22
        %692 = vperm.xlu0 %691, %v291
        %v693 = vpop.permute.xlu0 %692
        %vm694 = vcmp.eq.s32.totalorder %v693, %v357
        %vm695 = vcmp.eq.s32.totalorder %v693, %v358
        %vm696 = vcmp.eq.s32.totalorder %v693, %v359
        %vm697 = vcmp.eq.s32.totalorder %v693, %v360
        %v698 = vsel %vm694, 1.0, 0.0
        %v699 = vsel %vm695, 1.0, 0.0
        %v700 = vsel %vm696, 1.0, 0.0
        %v701 = vsel %vm697, 1.0, 0.0
        %v702 = vadd.f32 %v687, %v698
        %v703 = vadd.f32 %v688, %v699
        %v704 = vadd.f32 %v689, %v700
        %v705 = vadd.f32 %v690, %v701
        %706 = vset.pattern.permute.xlu0 23
        %707 = vperm.xlu0 %706, %v291
        %v708 = vpop.permute.xlu0 %707
        %vm709 = vcmp.eq.s32.totalorder %v708, %v357
        %vm710 = vcmp.eq.s32.totalorder %v708, %v358
        %vm711 = vcmp.eq.s32.totalorder %v708, %v359
        %vm712 = vcmp.eq.s32.totalorder %v708, %v360
        %v713 = vsel %vm709, 1.0, 0.0
        %v714 = vsel %vm710, 1.0, 0.0
        %v715 = vsel %vm711, 1.0, 0.0
        %v716 = vsel %vm712, 1.0, 0.0
        %v717 = vadd.f32 %v702, %v713
        %v718 = vadd.f32 %v703, %v714
        %v719 = vadd.f32 %v704, %v715
        %v720 = vadd.f32 %v705, %v716
        %721 = vset.pattern.permute.xlu0 24
        %722 = vperm.xlu0 %721, %v291
        %v723 = vpop.permute.xlu0 %722
        %vm724 = vcmp.eq.s32.totalorder %v723, %v357
        %vm725 = vcmp.eq.s32.totalorder %v723, %v358
        %vm726 = vcmp.eq.s32.totalorder %v723, %v359
        %vm727 = vcmp.eq.s32.totalorder %v723, %v360
        %v728 = vsel %vm724, 1.0, 0.0
        %v729 = vsel %vm725, 1.0, 0.0
        %v730 = vsel %vm726, 1.0, 0.0
        %v731 = vsel %vm727, 1.0, 0.0
        %v732 = vadd.f32 %v717, %v728
        %v733 = vadd.f32 %v718, %v729
        %v734 = vadd.f32 %v719, %v730
        %v735 = vadd.f32 %v720, %v731
        %736 = vset.pattern.permute.xlu0 25
        %737 = vperm.xlu0 %736, %v291
        %v738 = vpop.permute.xlu0 %737
        %vm739 = vcmp.eq.s32.totalorder %v738, %v357
        %vm740 = vcmp.eq.s32.totalorder %v738, %v358
        %vm741 = vcmp.eq.s32.totalorder %v738, %v359
        %vm742 = vcmp.eq.s32.totalorder %v738, %v360
        %v743 = vsel %vm739, 1.0, 0.0
        %v744 = vsel %vm740, 1.0, 0.0
        %v745 = vsel %vm741, 1.0, 0.0
        %v746 = vsel %vm742, 1.0, 0.0
        %v747 = vadd.f32 %v732, %v743
        %v748 = vadd.f32 %v733, %v744
        %v749 = vadd.f32 %v734, %v745
        %v750 = vadd.f32 %v735, %v746
        %751 = vset.pattern.permute.xlu0 26
        %752 = vperm.xlu0 %751, %v291
        %v753 = vpop.permute.xlu0 %752
        %vm754 = vcmp.eq.s32.totalorder %v753, %v357
        %vm755 = vcmp.eq.s32.totalorder %v753, %v358
        %vm756 = vcmp.eq.s32.totalorder %v753, %v359
        %vm757 = vcmp.eq.s32.totalorder %v753, %v360
        %v758 = vsel %vm754, 1.0, 0.0
        %v759 = vsel %vm755, 1.0, 0.0
        %v760 = vsel %vm756, 1.0, 0.0
        %v761 = vsel %vm757, 1.0, 0.0
        %v762 = vadd.f32 %v747, %v758
        %v763 = vadd.f32 %v748, %v759
        %v764 = vadd.f32 %v749, %v760
        %v765 = vadd.f32 %v750, %v761
        %766 = vset.pattern.permute.xlu0 27
        %767 = vperm.xlu0 %766, %v291
        %v768 = vpop.permute.xlu0 %767
        %vm769 = vcmp.eq.s32.totalorder %v768, %v357
        %vm770 = vcmp.eq.s32.totalorder %v768, %v358
        %vm771 = vcmp.eq.s32.totalorder %v768, %v359
        %vm772 = vcmp.eq.s32.totalorder %v768, %v360
        %v773 = vsel %vm769, 1.0, 0.0
        %v774 = vsel %vm770, 1.0, 0.0
        %v775 = vsel %vm771, 1.0, 0.0
        %v776 = vsel %vm772, 1.0, 0.0
        %v777 = vadd.f32 %v762, %v773
        %v778 = vadd.f32 %v763, %v774
        %v779 = vadd.f32 %v764, %v775
        %v780 = vadd.f32 %v765, %v776
        %781 = vset.pattern.permute.xlu0 28
        %782 = vperm.xlu0 %781, %v291
        %v783 = vpop.permute.xlu0 %782
        %vm784 = vcmp.eq.s32.totalorder %v783, %v357
        %vm785 = vcmp.eq.s32.totalorder %v783, %v358
        %vm786 = vcmp.eq.s32.totalorder %v783, %v359
        %vm787 = vcmp.eq.s32.totalorder %v783, %v360
        %v788 = vsel %vm784, 1.0, 0.0
        %v789 = vsel %vm785, 1.0, 0.0
        %v790 = vsel %vm786, 1.0, 0.0
        %v791 = vsel %vm787, 1.0, 0.0
        %v792 = vadd.f32 %v777, %v788
        %v793 = vadd.f32 %v778, %v789
        %v794 = vadd.f32 %v779, %v790
        %v795 = vadd.f32 %v780, %v791
        %796 = vset.pattern.permute.xlu0 29
        %797 = vperm.xlu0 %796, %v291
        %v798 = vpop.permute.xlu0 %797
        %vm799 = vcmp.eq.s32.totalorder %v798, %v357
        %vm800 = vcmp.eq.s32.totalorder %v798, %v358
        %vm801 = vcmp.eq.s32.totalorder %v798, %v359
        %vm802 = vcmp.eq.s32.totalorder %v798, %v360
        %v803 = vsel %vm799, 1.0, 0.0
        %v804 = vsel %vm800, 1.0, 0.0
        %v805 = vsel %vm801, 1.0, 0.0
        %v806 = vsel %vm802, 1.0, 0.0
        %v807 = vadd.f32 %v792, %v803
        %v808 = vadd.f32 %v793, %v804
        %v809 = vadd.f32 %v794, %v805
        %v810 = vadd.f32 %v795, %v806
        %811 = vset.pattern.permute.xlu0 30
        %812 = vperm.xlu0 %811, %v291
        %v813 = vpop.permute.xlu0 %812
        %vm814 = vcmp.eq.s32.totalorder %v813, %v357
        %vm815 = vcmp.eq.s32.totalorder %v813, %v358
        %vm816 = vcmp.eq.s32.totalorder %v813, %v359
        %vm817 = vcmp.eq.s32.totalorder %v813, %v360
        %v818 = vsel %vm814, 1.0, 0.0
        %v819 = vsel %vm815, 1.0, 0.0
        %v820 = vsel %vm816, 1.0, 0.0
        %v821 = vsel %vm817, 1.0, 0.0
        %v822 = vadd.f32 %v807, %v818
        %v823 = vadd.f32 %v808, %v819
        %v824 = vadd.f32 %v809, %v820
        %v825 = vadd.f32 %v810, %v821
        %826 = vset.pattern.permute.xlu0 31
        %827 = vperm.xlu0 %826, %v291
        %v828 = vpop.permute.xlu0 %827
        %vm829 = vcmp.eq.s32.totalorder %v828, %v357
        %vm830 = vcmp.eq.s32.totalorder %v828, %v358
        %vm831 = vcmp.eq.s32.totalorder %v828, %v359
        %vm832 = vcmp.eq.s32.totalorder %v828, %v360
        %v833 = vsel %vm829, 1.0, 0.0
        %v834 = vsel %vm830, 1.0, 0.0
        %v835 = vsel %vm831, 1.0, 0.0
        %v836 = vsel %vm832, 1.0, 0.0
        %v837 = vadd.f32 %v822, %v833
        %v838 = vadd.f32 %v823, %v834
        %v839 = vadd.f32 %v824, %v835
        %v840 = vadd.f32 %v825, %v836
        %841 = vmatprep.subr.mxu0 0.0
        %842 = vmatpush1.msra.mxu0 %v292
        %843 = vmatprep.subr.mxu0 0.0
        %844 = vmatpush1.msra.mxu0 %v293
        %845 = vmatprep.subr.mxu0 0.0
        %846 = vmatpush1.msra.mxu0 %v294
        %847 = vmatprep.subr.mxu0 0.0
        %848 = vmatpush1.msra.mxu0 %v295
        %849 = vmatprep.subr.mxu0 0.0
        %850 = vmatpush1.msra.mxu0 %v296
        %851 = vmatprep.subr.mxu0 0.0
        %852 = vmatpush1.msra.mxu0 %v297
        %853 = vmatprep.subr.mxu0 0.0
        %854 = vmatpush1.msra.mxu0 %v298
        %855 = vmatprep.subr.mxu0 0.0
        %856 = vmatpush1.msra.mxu0 %v299
        %857 = vmatprep.subr.mxu0 0.0
        %858 = vmatpush1.msra.mxu0 %v300
        %859 = vmatprep.subr.mxu0 0.0
        %860 = vmatpush1.msra.mxu0 %v301
        %861 = vmatprep.subr.mxu0 0.0
        %862 = vmatpush1.msra.mxu0 %v302
        %863 = vmatprep.subr.mxu0 0.0
        %864 = vmatpush1.msra.mxu0 %v303
        %865 = vmatprep.subr.mxu0 0.0
        %866 = vmatpush1.msra.mxu0 %v304
        %867 = vmatprep.subr.mxu0 0.0
        %868 = vmatpush1.msra.mxu0 %v305
        %869 = vmatprep.subr.mxu0 0.0
        %870 = vmatpush1.msra.mxu0 %v306
        %871 = vmatprep.subr.mxu0 0.0
        %872 = vmatpush1.msra.mxu0 %v307
        %873 = vmatprep.subr.mxu0 0.0
        %874 = vmatpush1.msra.mxu0 %v308
        %875 = vmatprep.subr.mxu0 0.0
        %876 = vmatpush1.msra.mxu0 %v309
        %877 = vmatprep.subr.mxu0 0.0
        %878 = vmatpush1.msra.mxu0 %v310
        %879 = vmatprep.subr.mxu0 0.0
        %880 = vmatpush1.msra.mxu0 %v311
        %881 = vmatprep.subr.mxu0 0.0
        %882 = vmatpush1.msra.mxu0 %v312
        %883 = vmatprep.subr.mxu0 0.0
        %884 = vmatpush1.msra.mxu0 %v313
        %885 = vmatprep.subr.mxu0 0.0
        %886 = vmatpush1.msra.mxu0 %v314
        %887 = vmatprep.subr.mxu0 0.0
        %888 = vmatpush1.msra.mxu0 %v315
        %889 = vmatprep.subr.mxu0 0.0
        %890 = vmatpush1.msra.mxu0 %v316
        %891 = vmatprep.subr.mxu0 0.0
        %892 = vmatpush1.msra.mxu0 %v317
        %893 = vmatprep.subr.mxu0 0.0
        %894 = vmatpush1.msra.mxu0 %v318
        %895 = vmatprep.subr.mxu0 0.0
        %896 = vmatpush1.msra.mxu0 %v319
        %897 = vmatprep.subr.mxu0 0.0
        %898 = vmatpush1.msra.mxu0 %v320
        %899 = vmatprep.subr.mxu0 0.0
        %900 = vmatpush1.msra.mxu0 %v321
        %901 = vmatprep.subr.mxu0 0.0
        %902 = vmatpush1.msra.mxu0 %v322
        %903 = vmatprep.subr.mxu0 0.0
        %904 = vmatpush1.msra.mxu0 %v323
        %905 = vmatprep.mubr.f32.mxu0 %v838
        %906 = vmatmul.mubr.f32.gmra.mrb[0].mxu0 %v837
        %v907 = vpop.f32.mrb[0].mxu0
        %v908 = vadd.f32 0.0, %v907
        %v909 = vpop.f32.mrb[0].mxu0
        %910 = vdwg.mxu0
        %911 = vmatprep.subr.mxu0 0.0
        %912 = vmatpush1.msra.mxu0 %v324
        %913 = vmatprep.subr.mxu0 0.0
        %914 = vmatpush1.msra.mxu0 %v325
        %915 = vmatprep.subr.mxu0 0.0
        %916 = vmatpush1.msra.mxu0 %v326
        %917 = vmatprep.subr.mxu0 0.0
        %918 = vmatpush1.msra.mxu0 %v327
        %919 = vmatprep.subr.mxu0 0.0
        %920 = vmatpush1.msra.mxu0 %v328
        %921 = vmatprep.subr.mxu0 0.0
        %922 = vmatpush1.msra.mxu0 %v329
        %923 = vmatprep.subr.mxu0 0.0
        %924 = vmatpush1.msra.mxu0 %v330
        %925 = vmatprep.subr.mxu0 0.0
        %926 = vmatpush1.msra.mxu0 %v331
        %927 = vmatprep.subr.mxu0 0.0
        %928 = vmatpush1.msra.mxu0 %v332
        %929 = vmatprep.subr.mxu0 0.0
        %930 = vmatpush1.msra.mxu0 %v333
        %931 = vmatprep.subr.mxu0 0.0
        %932 = vmatpush1.msra.mxu0 %v334
        %933 = vmatprep.subr.mxu0 0.0
        %934 = vmatpush1.msra.mxu0 %v335
        %935 = vmatprep.subr.mxu0 0.0
        %936 = vmatpush1.msra.mxu0 %v336
        %937 = vmatprep.subr.mxu0 0.0
        %938 = vmatpush1.msra.mxu0 %v337
        %939 = vmatprep.subr.mxu0 0.0
        %940 = vmatpush1.msra.mxu0 %v338
        %941 = vmatprep.subr.mxu0 0.0
        %942 = vmatpush1.msra.mxu0 %v339
        %943 = vmatprep.subr.mxu0 0.0
        %944 = vmatpush1.msra.mxu0 %v340
        %945 = vmatprep.subr.mxu0 0.0
        %946 = vmatpush1.msra.mxu0 %v341
        %947 = vmatprep.subr.mxu0 0.0
        %948 = vmatpush1.msra.mxu0 %v342
        %949 = vmatprep.subr.mxu0 0.0
        %950 = vmatpush1.msra.mxu0 %v343
        %951 = vmatprep.subr.mxu0 0.0
        %952 = vmatpush1.msra.mxu0 %v344
        %953 = vmatprep.subr.mxu0 0.0
        %954 = vmatpush1.msra.mxu0 %v345
        %955 = vmatprep.subr.mxu0 0.0
        %956 = vmatpush1.msra.mxu0 %v346
        %957 = vmatprep.subr.mxu0 0.0
        %958 = vmatpush1.msra.mxu0 %v347
        %959 = vmatprep.subr.mxu0 0.0
        %960 = vmatpush1.msra.mxu0 %v348
        %961 = vmatprep.subr.mxu0 0.0
        %962 = vmatpush1.msra.mxu0 %v349
        %963 = vmatprep.subr.mxu0 0.0
        %964 = vmatpush1.msra.mxu0 %v350
        %965 = vmatprep.subr.mxu0 0.0
        %966 = vmatpush1.msra.mxu0 %v351
        %967 = vmatprep.subr.mxu0 0.0
        %968 = vmatpush1.msra.mxu0 %v352
        %969 = vmatprep.subr.mxu0 0.0
        %970 = vmatpush1.msra.mxu0 %v353
        %971 = vmatprep.subr.mxu0 0.0
        %972 = vmatpush1.msra.mxu0 %v354
        %973 = vmatprep.subr.mxu0 0.0
        %974 = vmatpush1.msra.mxu0 %v355
        %975 = vmatprep.mubr.f32.mxu0 %v840
        %976 = vmatmul.mubr.f32.gmra.mrb[0].mxu0 %v839
        %v977 = vpop.f32.mrb[0].mxu0
        %v978 = vadd.f32 %v908, %v977
        %v979 = vpop.f32.mrb[0].mxu0
        %980 = vdwg.mxu0
        %v981 = vld [vmem:[#allocation4] sm:$0xff]
        %v982 = vld [vmem:[#allocation4 + $0x8] sm:$0xff]
        %v983 = vld [vmem:[#allocation4 + $0x10] sm:$0xff]
        %v984 = vld [vmem:[#allocation4 + $0x18] sm:$0xff]
        %v985 = vld [vmem:[#allocation4 + $0x20] sm:$0xff]
        %v986 = vld [vmem:[#allocation4 + $0x28] sm:$0xff]
        %v987 = vld [vmem:[#allocation4 + $0x30] sm:$0xff]
        %v988 = vld [vmem:[#allocation4 + $0x38] sm:$0xff]
        %v989 = vld [vmem:[#allocation4 + $0x40] sm:$0xff]
        %v990 = vld [vmem:[#allocation4 + $0x48] sm:$0xff]
        %v991 = vld [vmem:[#allocation4 + $0x50] sm:$0xff]
        %v992 = vld [vmem:[#allocation4 + $0x58] sm:$0xff]
        %v993 = vld [vmem:[#allocation4 + $0x60] sm:$0xff]
        %v994 = vld [vmem:[#allocation4 + $0x68] sm:$0xff]
        %v995 = vld [vmem:[#allocation4 + $0x70] sm:$0xff]
        %v996 = vld [vmem:[#allocation4 + $0x78] sm:$0xff]
        %v997 = vld [vmem:[%s3] sm:$0x1]
        %v999 = vlaneseq
        %v1000 = vshrl.u32 %v999, 7
        %v1001 = vsub.s32 0, %v1000
        %v1002 = vrot.slane %v997, %v1001
        %1004 = vmatprep.subr.mxu0 0.0
        %1005 = vmatpush1.msra.mxu0 %v981
        %1006 = vmatprep.subr.mxu0 0.0
        %1007 = vmatpush1.msra.mxu0 %v982
        %1008 = vmatprep.subr.mxu0 0.0
        %1009 = vmatpush1.msra.mxu0 %v983
        %1010 = vmatprep.subr.mxu0 0.0
        %1011 = vmatpush1.msra.mxu0 %v984
        %1012 = vmatprep.subr.mxu0 0.0
        %1013 = vmatpush1.msra.mxu0 %v985
        %1014 = vmatprep.subr.mxu0 0.0
        %1015 = vmatpush1.msra.mxu0 %v986
        %1016 = vmatprep.subr.mxu0 0.0
        %1017 = vmatpush1.msra.mxu0 %v987
        %1018 = vmatprep.subr.mxu0 0.0
        %1019 = vmatpush1.msra.mxu0 %v988
        %1020 = vmatprep.subr.mxu0 0.0
        %1021 = vmatpush1.msra.mxu0 %v989
        %1022 = vmatprep.subr.mxu0 0.0
        %1023 = vmatpush1.msra.mxu0 %v990
        %1024 = vmatprep.subr.mxu0 0.0
        %1025 = vmatpush1.msra.mxu0 %v991
        %1026 = vmatprep.subr.mxu0 0.0
        %1027 = vmatpush1.msra.mxu0 %v992
        %1028 = vmatprep.subr.mxu0 0.0
        %1029 = vmatpush1.msra.mxu0 %v993
        %1030 = vmatprep.subr.mxu0 0.0
        %1031 = vmatpush1.msra.mxu0 %v994
        %1032 = vmatprep.subr.mxu0 0.0
        %1033 = vmatpush1.msra.mxu0 %v995
        %1034 = vmatprep.subr.mxu0 0.0
        %1035 = vmatpush1.msra.mxu0 %v996
        %1036 = vmatprep.subr.mxu0 0.0
        %1037 = vmatpush1.msra.mxu0 0.0
        %1038 = vmatprep.subr.mxu0 0.0
        %1039 = vmatpush1.msra.mxu0 0.0
        %1040 = vmatprep.subr.mxu0 0.0
        %1041 = vmatpush1.msra.mxu0 0.0
        %1042 = vmatprep.subr.mxu0 0.0
        %1043 = vmatpush1.msra.mxu0 0.0
        %1044 = vmatprep.subr.mxu0 0.0
        %1045 = vmatpush1.msra.mxu0 0.0
        %1046 = vmatprep.subr.mxu0 0.0
        %1047 = vmatpush1.msra.mxu0 0.0
        %1048 = vmatprep.subr.mxu0 0.0
        %1049 = vmatpush1.msra.mxu0 0.0
        %1050 = vmatprep.subr.mxu0 0.0
        %1051 = vmatpush1.msra.mxu0 0.0
        %1052 = vmatprep.subr.mxu0 0.0
        %1053 = vmatpush1.msra.mxu0 0.0
        %1054 = vmatprep.subr.mxu0 0.0
        %1055 = vmatpush1.msra.mxu0 0.0
        %1056 = vmatprep.subr.mxu0 0.0
        %1057 = vmatpush1.msra.mxu0 0.0
        %1058 = vmatprep.subr.mxu0 0.0
        %1059 = vmatpush1.msra.mxu0 0.0
        %1060 = vmatprep.subr.mxu0 0.0
        %1061 = vmatpush1.msra.mxu0 0.0
        %1062 = vmatprep.subr.mxu0 0.0
        %1063 = vmatpush1.msra.mxu0 0.0
        %1064 = vmatprep.subr.mxu0 0.0
        %1065 = vmatpush1.msra.mxu0 0.0
        %1066 = vmatprep.subr.mxu0 0.0
        %1067 = vmatpush1.msra.mxu0 0.0
        %1068 = vmatprep.mubr.f32.mxu0 0.0
        %1069 = vmatmul.mubr.f32.gmra.mrb[0].mxu0 %v978
        %v1070 = vpop.f32.mrb[0].mxu0
        %v1071 = vadd.f32 %v1002, %v1070
        %v1072 = vpop.f32.mrb[0].mxu0
        %1073 = vdwg.mxu0
        %v1074 = vmax.f32 %v1071, 0.0
        %v1075 = vld [vmem:[#allocation6] sm:$0xff]
        %v1076 = vld [vmem:[#allocation6 + $0x8] sm:$0xff]
        %v1077 = vld [vmem:[#allocation6 + $0x10] sm:$0xff]
        %v1078 = vld [vmem:[#allocation6 + $0x18] sm:$0xff]
        %v1079 = vld [vmem:[#allocation6 + $0x20] sm:$0xff]
        %v1080 = vld [vmem:[#allocation6 + $0x28] sm:$0xff]
        %v1081 = vld [vmem:[#allocation6 + $0x30] sm:$0xff]
        %v1082 = vld [vmem:[#allocation6 + $0x38] sm:$0xff]
        %v1083 = vld [vmem:[#allocation6 + $0x40] sm:$0xff]
        %v1084 = vld [vmem:[#allocation6 + $0x48] sm:$0xff]
        %v1085 = vld [vmem:[#allocation6 + $0x50] sm:$0xff]
        %v1086 = vld [vmem:[#allocation6 + $0x58] sm:$0xff]
        %v1087 = vld [vmem:[#allocation6 + $0x60] sm:$0xff]
        %v1088 = vld [vmem:[#allocation6 + $0x68] sm:$0xff]
        %v1089 = vld [vmem:[#allocation6 + $0x70] sm:$0xff]
        %v1090 = vld [vmem:[#allocation6 + $0x78] sm:$0xff]
        %v1091 = vld [vmem:[%s5] sm:$0x1]
        %v1093 = vlaneseq
        %v1094 = vshrl.u32 %v1093, 7
        %v1095 = vsub.s32 0, %v1094
        %v1096 = vrot.slane %v1091, %v1095
        %1098 = vmatprep.subr.mxu0 0.0
        %1099 = vmatpush1.msra.mxu0 %v1075
        %1100 = vmatprep.subr.mxu0 0.0
        %1101 = vmatpush1.msra.mxu0 %v1076
        %1102 = vmatprep.subr.mxu0 0.0
        %1103 = vmatpush1.msra.mxu0 %v1077
        %1104 = vmatprep.subr.mxu0 0.0
        %1105 = vmatpush1.msra.mxu0 %v1078
        %1106 = vmatprep.subr.mxu0 0.0
        %1107 = vmatpush1.msra.mxu0 %v1079
        %1108 = vmatprep.subr.mxu0 0.0
        %1109 = vmatpush1.msra.mxu0 %v1080
        %1110 = vmatprep.subr.mxu0 0.0
        %1111 = vmatpush1.msra.mxu0 %v1081
        %1112 = vmatprep.subr.mxu0 0.0
        %1113 = vmatpush1.msra.mxu0 %v1082
        %1114 = vmatprep.subr.mxu0 0.0
        %1115 = vmatpush1.msra.mxu0 %v1083
        %1116 = vmatprep.subr.mxu0 0.0
        %1117 = vmatpush1.msra.mxu0 %v1084
        %1118 = vmatprep.subr.mxu0 0.0
        %1119 = vmatpush1.msra.mxu0 %v1085
        %1120 = vmatprep.subr.mxu0 0.0
        %1121 = vmatpush1.msra.mxu0 %v1086
        %1122 = vmatprep.subr.mxu0 0.0
        %1123 = vmatpush1.msra.mxu0 %v1087
        %1124 = vmatprep.subr.mxu0 0.0
        %1125 = vmatpush1.msra.mxu0 %v1088
        %1126 = vmatprep.subr.mxu0 0.0
        %1127 = vmatpush1.msra.mxu0 %v1089
        %1128 = vmatprep.subr.mxu0 0.0
        %1129 = vmatpush1.msra.mxu0 %v1090
        %1130 = vmatprep.subr.mxu0 0.0
        %1131 = vmatpush1.msra.mxu0 0.0
        %1132 = vmatprep.subr.mxu0 0.0
        %1133 = vmatpush1.msra.mxu0 0.0
        %1134 = vmatprep.subr.mxu0 0.0
        %1135 = vmatpush1.msra.mxu0 0.0
        %1136 = vmatprep.subr.mxu0 0.0
        %1137 = vmatpush1.msra.mxu0 0.0
        %1138 = vmatprep.subr.mxu0 0.0
        %1139 = vmatpush1.msra.mxu0 0.0
        %1140 = vmatprep.subr.mxu0 0.0
        %1141 = vmatpush1.msra.mxu0 0.0
        %1142 = vmatprep.subr.mxu0 0.0
        %1143 = vmatpush1.msra.mxu0 0.0
        %1144 = vmatprep.subr.mxu0 0.0
        %1145 = vmatpush1.msra.mxu0 0.0
        %1146 = vmatprep.subr.mxu0 0.0
        %1147 = vmatpush1.msra.mxu0 0.0
        %1148 = vmatprep.subr.mxu0 0.0
        %1149 = vmatpush1.msra.mxu0 0.0
        %1150 = vmatprep.subr.mxu0 0.0
        %1151 = vmatpush1.msra.mxu0 0.0
        %1152 = vmatprep.subr.mxu0 0.0
        %1153 = vmatpush1.msra.mxu0 0.0
        %1154 = vmatprep.subr.mxu0 0.0
        %1155 = vmatpush1.msra.mxu0 0.0
        %1156 = vmatprep.subr.mxu0 0.0
        %1157 = vmatpush1.msra.mxu0 0.0
        %1158 = vmatprep.subr.mxu0 0.0
        %1159 = vmatpush1.msra.mxu0 0.0
        %1160 = vmatprep.subr.mxu0 0.0
        %1161 = vmatpush1.msra.mxu0 0.0
        %1162 = vmatprep.mubr.f32.mxu0 0.0
        %1163 = vmatmul.mubr.f32.gmra.mrb[0].mxu0 %v1074
        %v1164 = vpop.f32.mrb[0].mxu0
        %v1165 = vadd.f32 %v1096, %v1164
        %v1166 = vpop.f32.mrb[0].mxu0
        %1167 = vdwg.mxu0
        %1168 = vst [vmem:[%s290] sm:$0xff] %v1165
        %p1169 = scmp.lt.s32.totalorder %s19, 3
        %s1170 = scalar_select %p1169, %s19, 3
        %s1171 = smul.addr %s1170, 8
        %s1172 = scalar_lea.vmem %s6, %s1171
        // Predicated region
        $region57: #{fasttext_forward.1} parent=43 // pred_check
          %p1173 = pneg %p168
        $region58: #{fasttext_forward.1} parent=43 // pred_check_branch
          %1175 = sbr.rel (%p1173) target = $region60
        $region59: #{fasttext_forward.1} parent=43 // pred_region
          _
        $region60: #{fasttext_forward.1} parent=43 // pred_fallthru
          _
      $region44: #{fasttext_forward.1} parent=5 // pred_fallthru
        _
      %p1176 = scmp.le.s32.totalorder 2, %s14
      // Predicated region
      $region61: #{fasttext_forward.1} parent=5 // pred_check
        %p1177 = pneg %p1176
      $region62: #{fasttext_forward.1} parent=5 // pred_check_branch
        %1179 = sbr.rel (%p1177) target = $region64
      $region63: #{fasttext_forward.1} parent=5 // pred_region
        %s1180 = ssub.s32 %s14, 2
        // Predicated region
        $region65: #{fasttext_forward.1} parent=63 // pred_check
          %p1181 = pneg %p174
        $region66: #{fasttext_forward.1} parent=63 // pred_check_branch
          %1183 = sbr.rel (%p1181) target = $region68
        $region67: #{fasttext_forward.1} parent=63 // pred_region
          %p1184 = scmp.lt.s32.totalorder %s20, 3
          %s1185 = scalar_select %p1184, %s20, 3
          %s1186 = smul.addr %s1185, 8
          %s1187 = scalar_lea.vmem %s6, %s1186
        $region68: #{fasttext_forward.1} parent=63 // pred_fallthru
          _
      $region64: #{fasttext_forward.1} parent=5 // pred_fallthru
        _
    $region6: #{fasttext_forward.1} parent=1 // loop_footer
      %s18 = sadd.s32 1, %s14
    $region7: #{fasttext_forward.1} parent=1 // loop_footer_branch
      %13 = sbr.rel target = $region3
    $region8: #{fasttext_forward.1} parent=1 // loop_exit
      _
    %1188 = vsyncpa [#allocation3], 1
    %s1189 = scalar_lea.sflag [#allocation3], 1
    %1190 = vsyncpa %s1189, 1
    %1191 = vsyncpa [#allocation5], 1

</llo_original>
